<compile_context>
chip_gen: v7x
topology: tpu7x:2x2x1
jax: 0.10.0
libtpu: 0.0.40
codegen_flags: <defaults>
</compile_context>

<pallas_src>
import jax
import jax.numpy as jnp
import numpy as np
from jax.experimental import pallas as pl
from jax.experimental.pallas import tpu as pltpu

# ---- static sizes (small, consistent with the module) ----
N, CIN, H, W = 2, 3, 16, 16
COUT = 6                        # conv out channels (folded away at trace time)
LOUT = 2                        # linear out features == fused output channels
KH = KW = 3

CPAD = 8                        # input channels padded to one full sublane tile
KM = 8                          # output-channel rows padded to 8 sublanes
HP, WP = H + 2, W + 2           # physically zero-padded image (conv padding=1)
PP = HP * WP                    # 324 padded pixels per image
TOTAL_P = N * PP                # 648 flattened padded pixels (lane axis)
LPAD = 32                       # left lane pad (>= max tap shift of 19)
OUT_LANES = 768                 # output lanes: multiple of 128, >= TOTAL_P
XLANES = 896                    # input lanes: multiple of 128,
                                #   >= LPAD + 19 + OUT_LANES = 819
BIAS_CH = CIN                   # padded-channel row 3 holds constant 1.0
CENTER = (KH // 2) * KW + (KW // 2)   # tap index 4 (dh=1, dw=1, shift 0)


def conv_linear_kernel(w_ref, x_ref, out_ref):
    """Fused conv3x3(pad=1) + channel-Linear(6->2) as 9 accumulated matmuls.

    w_ref  : (9, KM, CPAD) VMEM.  w_ref[g, k, ci] is the folded weight for tap
             g = dh*3 + dw, output channel k (< LOUT), padded input channel ci.
             Column BIAS_CH of the center tap carries the folded bias.
    x_ref  : (CPAD, XLANES) VMEM.  Rows 0..2: input channels as physically
             zero-padded images, flattened (n, ip, jp) on lanes at offset LPAD.
             Row 3: constant ones (bias channel).  Rows 4..7: zeros.
    out_ref: (KM, OUT_LANES) VMEM.  Rows >= LOUT are zero; only interior-pixel
             lanes are meaningful (border lanes are discarded by the wrapper).
    """
    acc = jnp.zeros((KM, OUT_LANES), jnp.float32)
    for g in range(KH * KW):
        dh, dw = g // KW, g % KW
        s = (dh - 1) * WP + (dw - 1)                # static lane shift, |s|<=19
        window = x_ref[:, LPAD + s:LPAD + s + OUT_LANES]   # (CPAD, OUT_LANES)
        acc = acc + jnp.dot(w_ref[g], window,
                            preferred_element_type=jnp.float32)
    out_ref[...] = acc


@jax.jit
def model_forward(x, conv_w, conv_b, lin_w, lin_b):
    """x: (N, CIN, H, W) float32 -> (N, LOUT, H, W) float32."""
    # --- fold Linear into the conv (pure wrapper algebra) ---
    w_eff = jnp.einsum("kc,cihw->kihw", lin_w, conv_w)       # (LOUT, CIN, 3, 3)
    b_eff = lin_b + lin_w @ conv_b                            # (LOUT,)

    # --- (9, KM, CPAD) folded weights; bias in the center tap, channel 3 ---
    w_g = jnp.transpose(w_eff, (2, 3, 0, 1)).reshape(KH * KW, LOUT, CIN)
    wmat = jnp.zeros((KH * KW, KM, CPAD), jnp.float32)
    wmat = wmat.at[:, :LOUT, :CIN].set(w_g)
    wmat = wmat.at[CENTER, :LOUT, BIAS_CH].set(b_eff)

    # --- lane-dense, physically zero-padded input layout (CPAD, XLANES) ---
    x_sp = jnp.pad(x, ((0, 0), (0, 0), (1, 1), (1, 1)))       # (N, CIN, HP, WP)
    x_fl = jnp.transpose(x_sp, (1, 0, 2, 3)).reshape(CIN, TOTAL_P)
    xbuf = jnp.zeros((CPAD, XLANES), jnp.float32)
    xbuf = xbuf.at[:CIN, LPAD:LPAD + TOTAL_P].set(x_fl)
    xbuf = xbuf.at[BIAS_CH, :].set(1.0)                       # bias channel

    out_flat = pl.pallas_call(
        conv_linear_kernel,
        out_shape=jax.ShapeDtypeStruct((KM, OUT_LANES), jnp.float32),
        in_specs=[pl.BlockSpec(memory_space=pltpu.MemorySpace.VMEM),
                  pl.BlockSpec(memory_space=pltpu.MemorySpace.VMEM)],
        out_specs=pl.BlockSpec(memory_space=pltpu.MemorySpace.VMEM),
    )(wmat.astype(jnp.float32), xbuf.astype(jnp.float32))

    # --- layout plumbing back to (N, LOUT, H, W): keep interior pixels ---
    out = out_flat[:LOUT, :TOTAL_P].reshape(LOUT, N, HP, WP)
    out = out[:, :, 1:H + 1, 1:W + 1]
    return jnp.transpose(out, (1, 0, 2, 3))


def reference_forward(x, conv_w, conv_b, lin_w, lin_b):
    """Pure-JAX reference (conv + linear over channels), full f32 precision."""
    conv = jax.lax.conv_general_dilated(
        x, conv_w, window_strides=(1, 1), padding=((1, 1), (1, 1)),
        dimension_numbers=("NCHW", "OIHW", "NCHW"),
        precision=jax.lax.Precision.HIGHEST)
    conv = conv + conv_b[None, :, None, None]
    out = jnp.einsum("nchw,kc->nkhw", conv, lin_w,
                     precision=jax.lax.Precision.HIGHEST)
    return out + lin_b[None, :, None, None]


if __name__ == "__main__":
    key = jax.random.PRNGKey(0)
    k_x, k_cw, k_cb, k_lw, k_lb = jax.random.split(key, 5)

    x = jax.random.normal(k_x, (N, CIN, H, W), dtype=jnp.float32)

    # deterministic parameter init (PyTorch-like uniform bounds)
    fan_in_conv = CIN * KH * KW
    bound_c = 1.0 / np.sqrt(fan_in_conv)
    conv_w = jax.random.uniform(k_cw, (COUT, CIN, KH, KW), jnp.float32,
                                -bound_c, bound_c)
    conv_b = jax.random.uniform(k_cb, (COUT,), jnp.float32, -bound_c, bound_c)

    bound_l = 1.0 / np.sqrt(COUT)
    lin_w = jax.random.uniform(k_lw, (LOUT, COUT), jnp.float32,
                               -bound_l, bound_l)
    lin_b = jax.random.uniform(k_lb, (LOUT,), jnp.float32, -bound_l, bound_l)

    out = model_forward(x, conv_w, conv_b, lin_w, lin_b)
    out = jax.block_until_ready(out)

    ref = reference_forward(x, conv_w, conv_b, lin_w, lin_b)
    # Tolerance accounts for DEFAULT matmul precision in the kernel (MXU may
    # use bf16 passes for the f32 dot); real layout/indexing bugs produce
    # O(0.1..1) errors and are still caught.
    np.testing.assert_allclose(np.asarray(out), np.asarray(ref),
                               rtol=2e-2, atol=2e-2)

    print("KERNEL_OK")
</pallas_src>

<mosaic_0001>
module attributes {stable_mosaic.version = 11 : i64} {
  func.func @conv_linear_kernel(%arg0: memref<9x8x8xf32, #tpu.memory_space<vmem>>, %arg1: memref<8x896xf32, #tpu.memory_space<vmem>>, %arg2: memref<8x768xf32, #tpu.memory_space<vmem>>) attributes {dimension_semantics = [], scalar_prefetch = 0 : i64, scratch_operands = 0 : i64, tpu.core_type = #tpu.core_type<tc>} {
    %cst = arith.constant 0.000000e+00 : f32
    %0 = vector.broadcast %cst : f32 to vector<8x768xf32>
    %c0 = arith.constant 0 : index
    %c13 = arith.constant 13 : index
    %1 = vector.load %arg1[%c0, %c13] : memref<8x896xf32, #tpu.memory_space<vmem>>, vector<8x768xf32>
    %c0_0 = arith.constant 0 : index
    %c0_1 = arith.constant 0 : index
    %c0_2 = arith.constant 0 : index
    %2 = vector.load %arg0[%c0_0, %c0_1, %c0_2] : memref<9x8x8xf32, #tpu.memory_space<vmem>>, vector<1x8x8xf32>
    %3 = vector.shape_cast %2 : vector<1x8x8xf32> to vector<8x8xf32>
    %cst_3 = arith.constant dense<0.000000e+00> : vector<8x768xf32>
    %4 = tpu.matmul %3, %1, %cst_3 {dimension_numbers = #tpu.dot_dimension_numbers<[1], [0], [0], [1], [0, 0, 1, 1], [], []>} : vector<8x8xf32>, vector<8x768xf32>, vector<8x768xf32> -> vector<8x768xf32>
    %5 = arith.addf %0, %4 : vector<8x768xf32>
    %c0_4 = arith.constant 0 : index
    %c14 = arith.constant 14 : index
    %6 = vector.load %arg1[%c0_4, %c14] : memref<8x896xf32, #tpu.memory_space<vmem>>, vector<8x768xf32>
    %c1 = arith.constant 1 : index
    %c0_5 = arith.constant 0 : index
    %c0_6 = arith.constant 0 : index
    %7 = vector.load %arg0[%c1, %c0_5, %c0_6] : memref<9x8x8xf32, #tpu.memory_space<vmem>>, vector<1x8x8xf32>
    %8 = vector.shape_cast %7 : vector<1x8x8xf32> to vector<8x8xf32>
    %cst_7 = arith.constant dense<0.000000e+00> : vector<8x768xf32>
    %9 = tpu.matmul %8, %6, %cst_7 {dimension_numbers = #tpu.dot_dimension_numbers<[1], [0], [0], [1], [0, 0, 1, 1], [], []>} : vector<8x8xf32>, vector<8x768xf32>, vector<8x768xf32> -> vector<8x768xf32>
    %10 = arith.addf %5, %9 : vector<8x768xf32>
    %c0_8 = arith.constant 0 : index
    %c15 = arith.constant 15 : index
    %11 = vector.load %arg1[%c0_8, %c15] : memref<8x896xf32, #tpu.memory_space<vmem>>, vector<8x768xf32>
    %c2 = arith.constant 2 : index
    %c0_9 = arith.constant 0 : index
    %c0_10 = arith.constant 0 : index
    %12 = vector.load %arg0[%c2, %c0_9, %c0_10] : memref<9x8x8xf32, #tpu.memory_space<vmem>>, vector<1x8x8xf32>
    %13 = vector.shape_cast %12 : vector<1x8x8xf32> to vector<8x8xf32>
    %cst_11 = arith.constant dense<0.000000e+00> : vector<8x768xf32>
    %14 = tpu.matmul %13, %11, %cst_11 {dimension_numbers = #tpu.dot_dimension_numbers<[1], [0], [0], [1], [0, 0, 1, 1], [], []>} : vector<8x8xf32>, vector<8x768xf32>, vector<8x768xf32> -> vector<8x768xf32>
    %15 = arith.addf %10, %14 : vector<8x768xf32>
    %c0_12 = arith.constant 0 : index
    %c31 = arith.constant 31 : index
    %16 = vector.load %arg1[%c0_12, %c31] : memref<8x896xf32, #tpu.memory_space<vmem>>, vector<8x768xf32>
    %c3 = arith.constant 3 : index
    %c0_13 = arith.constant 0 : index
    %c0_14 = arith.constant 0 : index
    %17 = vector.load %arg0[%c3, %c0_13, %c0_14] : memref<9x8x8xf32, #tpu.memory_space<vmem>>, vector<1x8x8xf32>
    %18 = vector.shape_cast %17 : vector<1x8x8xf32> to vector<8x8xf32>
    %cst_15 = arith.constant dense<0.000000e+00> : vector<8x768xf32>
    %19 = tpu.matmul %18, %16, %cst_15 {dimension_numbers = #tpu.dot_dimension_numbers<[1], [0], [0], [1], [0, 0, 1, 1], [], []>} : vector<8x8xf32>, vector<8x768xf32>, vector<8x768xf32> -> vector<8x768xf32>
    %20 = arith.addf %15, %19 : vector<8x768xf32>
    %c0_16 = arith.constant 0 : index
    %c32 = arith.constant 32 : index
    %21 = vector.load %arg1[%c0_16, %c32] : memref<8x896xf32, #tpu.memory_space<vmem>>, vector<8x768xf32>
    %c4 = arith.constant 4 : index
    %c0_17 = arith.constant 0 : index
    %c0_18 = arith.constant 0 : index
    %22 = vector.load %arg0[%c4, %c0_17, %c0_18] : memref<9x8x8xf32, #tpu.memory_space<vmem>>, vector<1x8x8xf32>
    %23 = vector.shape_cast %22 : vector<1x8x8xf32> to vector<8x8xf32>
    %cst_19 = arith.constant dense<0.000000e+00> : vector<8x768xf32>
    %24 = tpu.matmul %23, %21, %cst_19 {dimension_numbers = #tpu.dot_dimension_numbers<[1], [0], [0], [1], [0, 0, 1, 1], [], []>} : vector<8x8xf32>, vector<8x768xf32>, vector<8x768xf32> -> vector<8x768xf32>
    %25 = arith.addf %20, %24 : vector<8x768xf32>
    %c0_20 = arith.constant 0 : index
    %c33 = arith.constant 33 : index
    %26 = vector.load %arg1[%c0_20, %c33] : memref<8x896xf32, #tpu.memory_space<vmem>>, vector<8x768xf32>
    %c5 = arith.constant 5 : index
    %c0_21 = arith.constant 0 : index
    %c0_22 = arith.constant 0 : index
    %27 = vector.load %arg0[%c5, %c0_21, %c0_22] : memref<9x8x8xf32, #tpu.memory_space<vmem>>, vector<1x8x8xf32>
    %28 = vector.shape_cast %27 : vector<1x8x8xf32> to vector<8x8xf32>
    %cst_23 = arith.constant dense<0.000000e+00> : vector<8x768xf32>
    %29 = tpu.matmul %28, %26, %cst_23 {dimension_numbers = #tpu.dot_dimension_numbers<[1], [0], [0], [1], [0, 0, 1, 1], [], []>} : vector<8x8xf32>, vector<8x768xf32>, vector<8x768xf32> -> vector<8x768xf32>
    %30 = arith.addf %25, %29 : vector<8x768xf32>
    %c0_24 = arith.constant 0 : index
    %c49 = arith.constant 49 : index
    %31 = vector.load %arg1[%c0_24, %c49] : memref<8x896xf32, #tpu.memory_space<vmem>>, vector<8x768xf32>
    %c6 = arith.constant 6 : index
    %c0_25 = arith.constant 0 : index
    %c0_26 = arith.constant 0 : index
    %32 = vector.load %arg0[%c6, %c0_25, %c0_26] : memref<9x8x8xf32, #tpu.memory_space<vmem>>, vector<1x8x8xf32>
    %33 = vector.shape_cast %32 : vector<1x8x8xf32> to vector<8x8xf32>
    %cst_27 = arith.constant dense<0.000000e+00> : vector<8x768xf32>
    %34 = tpu.matmul %33, %31, %cst_27 {dimension_numbers = #tpu.dot_dimension_numbers<[1], [0], [0], [1], [0, 0, 1, 1], [], []>} : vector<8x8xf32>, vector<8x768xf32>, vector<8x768xf32> -> vector<8x768xf32>
    %35 = arith.addf %30, %34 : vector<8x768xf32>
    %c0_28 = arith.constant 0 : index
    %c50 = arith.constant 50 : index
    %36 = vector.load %arg1[%c0_28, %c50] : memref<8x896xf32, #tpu.memory_space<vmem>>, vector<8x768xf32>
    %c7 = arith.constant 7 : index
    %c0_29 = arith.constant 0 : index
    %c0_30 = arith.constant 0 : index
    %37 = vector.load %arg0[%c7, %c0_29, %c0_30] : memref<9x8x8xf32, #tpu.memory_space<vmem>>, vector<1x8x8xf32>
    %38 = vector.shape_cast %37 : vector<1x8x8xf32> to vector<8x8xf32>
    %cst_31 = arith.constant dense<0.000000e+00> : vector<8x768xf32>
    %39 = tpu.matmul %38, %36, %cst_31 {dimension_numbers = #tpu.dot_dimension_numbers<[1], [0], [0], [1], [0, 0, 1, 1], [], []>} : vector<8x8xf32>, vector<8x768xf32>, vector<8x768xf32> -> vector<8x768xf32>
    %40 = arith.addf %35, %39 : vector<8x768xf32>
    %c0_32 = arith.constant 0 : index
    %c51 = arith.constant 51 : index
    %41 = vector.load %arg1[%c0_32, %c51] : memref<8x896xf32, #tpu.memory_space<vmem>>, vector<8x768xf32>
    %c8 = arith.constant 8 : index
    %c0_33 = arith.constant 0 : index
    %c0_34 = arith.constant 0 : index
    %42 = vector.load %arg0[%c8, %c0_33, %c0_34] : memref<9x8x8xf32, #tpu.memory_space<vmem>>, vector<1x8x8xf32>
    %43 = vector.shape_cast %42 : vector<1x8x8xf32> to vector<8x8xf32>
    %cst_35 = arith.constant dense<0.000000e+00> : vector<8x768xf32>
    %44 = tpu.matmul %43, %41, %cst_35 {dimension_numbers = #tpu.dot_dimension_numbers<[1], [0], [0], [1], [0, 0, 1, 1], [], []>} : vector<8x8xf32>, vector<8x768xf32>, vector<8x768xf32> -> vector<8x768xf32>
    %45 = arith.addf %40, %44 : vector<8x768xf32>
    %c0_36 = arith.constant 0 : index
    %c0_37 = arith.constant 0 : index
    %46 = vector.load %arg2[%c0_36, %c0_37] : memref<8x768xf32, #tpu.memory_space<vmem>>, vector<8x768xf32>
    tpu.vector_store %arg2[%c0_36, %c0_37], %45 {strides = array<i32>} : memref<8x768xf32, #tpu.memory_space<vmem>>, vector<8x768xf32>,
    return
  }
}

</mosaic_0001>

<llo_original>
// kernel: model_forward.1
$region0: #{model_forward.1}
  #allocation0 [shape = 'u32[]', space=smem, size = 0x4, offset = 0x4, fixed_abs, tag = 'smem constant byte address 0x4 - core index']
  #allocation1 [shape = 'u32[144,128]{1,0:T(1,128)}', space=vmem, size = 0x12000, scoped, tag = 'internal scratch']
  %s0 = inlined_call_operand.vmem [shape: f32[9,8,8], index: 0, kind: input, shape index: {}]
  %s1 = inlined_call_operand.vmem [shape: f32[8,896], index: 1, kind: input, shape index: {}]
  %s2 = inlined_call_operand.vmem [shape: f32[8,768], index: 2, kind: output, shape index: {}]
  %s3 = sld [smem:[#allocation0]]
  $region18: #{model_forward.1} parent=0
    _
  %s5 = ssub.s32 1, %s3
  %s6 = scalar_select 0, %s5, %s3
  // Predicated region
  $region2: #{model_forward.1} parent=0 // pred_check
    _
  $region3: #{model_forward.1} parent=0 // pred_check_branch
    %8 = sbr.rel (0) target = $region5
  $region4: #{model_forward.1} parent=0 // pred_region
    _
  $region5: #{model_forward.1} parent=0 // pred_fallthru
    _
  // Predicated region
  $region6: #{model_forward.1} parent=0 // pred_check
    _
  $region7: #{model_forward.1} parent=0 // pred_check_branch
    %10 = sbr.rel (0) target = $region9
  $region8: #{model_forward.1} parent=0 // pred_region
    _
  $region9: #{model_forward.1} parent=0 // pred_fallthru
    _
  %v11 = vld [vmem:[%s1] sm:$0xff]
  %v12 = vld [vmem:[%s1 + $0x8] sm:$0xff]
  %v13 = vld [vmem:[%s1 + $0x10] sm:$0xff]
  %v14 = vld [vmem:[%s1 + $0x18] sm:$0xff]
  %v15 = vld [vmem:[%s1 + $0x20] sm:$0xff]
  %v16 = vld [vmem:[%s1 + $0x28] sm:$0xff]
  %v17 = vld [vmem:[%s1 + $0x30] sm:$0xff]
  %v18 = vld [vmem:[%s0] sm:$0xff]
  %s19 = scalar_lea.vmem %s0, 8
  %v20 = vld [vmem:[%s19] sm:$0xff]
  %28 = vrot.lane.b32.xlu0 %v11, 114
  %v29 = vpop.permute.xlu0 %28
  %30 = vrot.lane.b32.xlu0 %v12, 114
  %v31 = vpop.permute.xlu0 %30
  %32 = vrot.lane.b32.xlu0 %v13, 114
  %v33 = vpop.permute.xlu0 %32
  %34 = vrot.lane.b32.xlu0 %v14, 114
  %v35 = vpop.permute.xlu0 %34
  %36 = vrot.lane.b32.xlu0 %v15, 114
  %v37 = vpop.permute.xlu0 %36
  %38 = vrot.lane.b32.xlu0 %v16, 114
  %v39 = vpop.permute.xlu0 %38
  %40 = vrot.lane.b32.xlu0 %v17, 114
  %v41 = vpop.permute.xlu0 %40
  %vm42 = vcmask 932864
  %v43 = vsel %vm42, %v29, %v31
  %v44 = vsel %vm42, %v31, %v33
  %v45 = vsel %vm42, %v33, %v35
  %v46 = vsel %vm42, %v35, %v37
  %v47 = vsel %vm42, %v37, %v39
  %v48 = vsel %vm42, %v39, %v41
  %vm55 = vcmask 64512
  %v57 = vsel %vm55, %v20, 0
  %59 = vmatprep.subr.mxu0 %v44
  %60 = vmatpush1.msra.mxu0 %v43
  %61 = vmatprep.subr.mxu0 0.0
  %62 = vmatpush1.msra.mxu0 0.0
  %63 = vmatprep.subr.mxu0 0.0
  %64 = vmatpush1.msra.mxu0 0.0
  %65 = vmatprep.subr.mxu0 0.0
  %66 = vmatpush1.msra.mxu0 0.0
  %67 = vmatprep.subr.mxu0 0.0
  %68 = vmatpush1.msra.mxu0 0.0
  %69 = vmatprep.subr.mxu0 0.0
  %70 = vmatpush1.msra.mxu0 0.0
  %71 = vmatprep.subr.mxu0 0.0
  %72 = vmatpush1.msra.mxu0 0.0
  %73 = vmatprep.subr.mxu0 0.0
  %74 = vmatpush1.msra.mxu0 0.0
  %75 = vmatprep.subr.mxu0 0.0
  %76 = vmatpush1.msra.mxu0 0.0
  %77 = vmatprep.subr.mxu0 0.0
  %78 = vmatpush1.msra.mxu0 0.0
  %79 = vmatprep.subr.mxu0 0.0
  %80 = vmatpush1.msra.mxu0 0.0
  %81 = vmatprep.subr.mxu0 0.0
  %82 = vmatpush1.msra.mxu0 0.0
  %83 = vmatprep.subr.mxu0 0.0
  %84 = vmatpush1.msra.mxu0 0.0
  %85 = vmatprep.subr.mxu0 0.0
  %86 = vmatpush1.msra.mxu0 0.0
  %87 = vmatprep.subr.mxu0 0.0
  %88 = vmatpush1.msra.mxu0 0.0
  %89 = vmatprep.subr.mxu0 0.0
  %90 = vmatpush1.msra.mxu0 0.0
  %91 = vmatprep.subr.mxu0 0.0
  %92 = vmatpush1.msra.mxu0 0.0
  %93 = vmatprep.subr.mxu0 0.0
  %94 = vmatpush1.msra.mxu0 0.0
  %95 = vmatprep.subr.mxu0 0.0
  %96 = vmatpush1.msra.mxu0 0.0
  %97 = vmatprep.subr.mxu0 0.0
  %98 = vmatpush1.msra.mxu0 0.0
  %99 = vmatprep.subr.mxu0 0.0
  %100 = vmatpush1.msra.mxu0 0.0
  %101 = vmatprep.subr.mxu0 0.0
  %102 = vmatpush1.msra.mxu0 0.0
  %103 = vmatprep.subr.mxu0 0.0
  %104 = vmatpush1.msra.mxu0 0.0
  %105 = vmatprep.subr.mxu0 0.0
  %106 = vmatpush1.msra.mxu0 0.0
  %107 = vmatprep.subr.mxu0 0.0
  %108 = vmatpush1.msra.mxu0 0.0
  %109 = vmatprep.subr.mxu0 0.0
  %110 = vmatpush1.msra.mxu0 0.0
  %111 = vmatprep.subr.mxu0 0.0
  %112 = vmatpush1.msra.mxu0 0.0
  %113 = vmatprep.subr.mxu0 0.0
  %114 = vmatpush1.msra.mxu0 0.0
  %115 = vmatprep.subr.mxu0 0.0
  %116 = vmatpush1.msra.mxu0 0.0
  %117 = vmatprep.subr.mxu0 0.0
  %118 = vmatpush1.msra.mxu0 0.0
  %119 = vmatprep.subr.mxu0 0.0
  %120 = vmatpush1.msra.mxu0 0.0
  %121 = vmatprep.subr.mxu0 0.0
  %122 = vmatpush1.msra.mxu0 0.0
  %123 = vmatprep.mubr.f32.mxu0 0.0
  %124 = vmatmul.mubr.f32.gmra.mrb[0].mxu0 %v57
  %v125 = vpop.f32.mrb[0].mxu0
  %v126 = vadd.f32 0.0, %v125
  %v127 = vpop.f32.mrb[0].mxu0
  %v128 = vadd.f32 0.0, %v127
  %129 = vdwg.mxu0
  %130 = vmatprep.subr.mxu0 %v46
  %131 = vmatpush1.msra.mxu0 %v45
  %132 = vmatprep.subr.mxu0 0.0
  %133 = vmatpush1.msra.mxu0 0.0
  %134 = vmatprep.subr.mxu0 0.0
  %135 = vmatpush1.msra.mxu0 0.0
  %136 = vmatprep.subr.mxu0 0.0
  %137 = vmatpush1.msra.mxu0 0.0
  %138 = vmatprep.subr.mxu0 0.0
  %139 = vmatpush1.msra.mxu0 0.0
  %140 = vmatprep.subr.mxu0 0.0
  %141 = vmatpush1.msra.mxu0 0.0
  %142 = vmatprep.subr.mxu0 0.0
  %143 = vmatpush1.msra.mxu0 0.0
  %144 = vmatprep.subr.mxu0 0.0
  %145 = vmatpush1.msra.mxu0 0.0
  %146 = vmatprep.subr.mxu0 0.0
  %147 = vmatpush1.msra.mxu0 0.0
  %148 = vmatprep.subr.mxu0 0.0
  %149 = vmatpush1.msra.mxu0 0.0
  %150 = vmatprep.subr.mxu0 0.0
  %151 = vmatpush1.msra.mxu0 0.0
  %152 = vmatprep.subr.mxu0 0.0
  %153 = vmatpush1.msra.mxu0 0.0
  %154 = vmatprep.subr.mxu0 0.0
  %155 = vmatpush1.msra.mxu0 0.0
  %156 = vmatprep.subr.mxu0 0.0
  %157 = vmatpush1.msra.mxu0 0.0
  %158 = vmatprep.subr.mxu0 0.0
  %159 = vmatpush1.msra.mxu0 0.0
  %160 = vmatprep.subr.mxu0 0.0
  %161 = vmatpush1.msra.mxu0 0.0
  %162 = vmatprep.subr.mxu0 0.0
  %163 = vmatpush1.msra.mxu0 0.0
  %164 = vmatprep.subr.mxu0 0.0
  %165 = vmatpush1.msra.mxu0 0.0
  %166 = vmatprep.subr.mxu0 0.0
  %167 = vmatpush1.msra.mxu0 0.0
  %168 = vmatprep.subr.mxu0 0.0
  %169 = vmatpush1.msra.mxu0 0.0
  %170 = vmatprep.subr.mxu0 0.0
  %171 = vmatpush1.msra.mxu0 0.0
  %172 = vmatprep.subr.mxu0 0.0
  %173 = vmatpush1.msra.mxu0 0.0
  %174 = vmatprep.subr.mxu0 0.0
  %175 = vmatpush1.msra.mxu0 0.0
  %176 = vmatprep.subr.mxu0 0.0
  %177 = vmatpush1.msra.mxu0 0.0
  %178 = vmatprep.subr.mxu0 0.0
  %179 = vmatpush1.msra.mxu0 0.0
  %180 = vmatprep.subr.mxu0 0.0
  %181 = vmatpush1.msra.mxu0 0.0
  %182 = vmatprep.subr.mxu0 0.0
  %183 = vmatpush1.msra.mxu0 0.0
  %184 = vmatprep.subr.mxu0 0.0
  %185 = vmatpush1.msra.mxu0 0.0
  %186 = vmatprep.subr.mxu0 0.0
  %187 = vmatpush1.msra.mxu0 0.0
  %188 = vmatprep.subr.mxu0 0.0
  %189 = vmatpush1.msra.mxu0 0.0
  %190 = vmatprep.subr.mxu0 0.0
  %191 = vmatpush1.msra.mxu0 0.0
  %192 = vmatprep.subr.mxu0 0.0
  %193 = vmatpush1.msra.mxu0 0.0
  %194 = vmatprep.mubr.f32.mxu0 0.0
  %195 = vmatmul.mubr.f32.gmra.mrb[0].mxu0 %v57
  %v196 = vpop.f32.mrb[0].mxu0
  %v197 = vadd.f32 0.0, %v196
  %v198 = vpop.f32.mrb[0].mxu0
  %v199 = vadd.f32 0.0, %v198
  %200 = vdwg.mxu0
  %201 = vmatprep.subr.mxu0 %v48
  %202 = vmatpush1.msra.mxu0 %v47
  %203 = vmatprep.subr.mxu0 0.0
  %204 = vmatpush1.msra.mxu0 0.0
  %205 = vmatprep.subr.mxu0 0.0
  %206 = vmatpush1.msra.mxu0 0.0
  %207 = vmatprep.subr.mxu0 0.0
  %208 = vmatpush1.msra.mxu0 0.0
  %209 = vmatprep.subr.mxu0 0.0
  %210 = vmatpush1.msra.mxu0 0.0
  %211 = vmatprep.subr.mxu0 0.0
  %212 = vmatpush1.msra.mxu0 0.0
  %213 = vmatprep.subr.mxu0 0.0
  %214 = vmatpush1.msra.mxu0 0.0
  %215 = vmatprep.subr.mxu0 0.0
  %216 = vmatpush1.msra.mxu0 0.0
  %217 = vmatprep.subr.mxu0 0.0
  %218 = vmatpush1.msra.mxu0 0.0
  %219 = vmatprep.subr.mxu0 0.0
  %220 = vmatpush1.msra.mxu0 0.0
  %221 = vmatprep.subr.mxu0 0.0
  %222 = vmatpush1.msra.mxu0 0.0
  %223 = vmatprep.subr.mxu0 0.0
  %224 = vmatpush1.msra.mxu0 0.0
  %225 = vmatprep.subr.mxu0 0.0
  %226 = vmatpush1.msra.mxu0 0.0
  %227 = vmatprep.subr.mxu0 0.0
  %228 = vmatpush1.msra.mxu0 0.0
  %229 = vmatprep.subr.mxu0 0.0
  %230 = vmatpush1.msra.mxu0 0.0
  %231 = vmatprep.subr.mxu0 0.0
  %232 = vmatpush1.msra.mxu0 0.0
  %233 = vmatprep.subr.mxu0 0.0
  %234 = vmatpush1.msra.mxu0 0.0
  %235 = vmatprep.subr.mxu0 0.0
  %236 = vmatpush1.msra.mxu0 0.0
  %237 = vmatprep.subr.mxu0 0.0
  %238 = vmatpush1.msra.mxu0 0.0
  %239 = vmatprep.subr.mxu0 0.0
  %240 = vmatpush1.msra.mxu0 0.0
  %241 = vmatprep.subr.mxu0 0.0
  %242 = vmatpush1.msra.mxu0 0.0
  %243 = vmatprep.subr.mxu0 0.0
  %244 = vmatpush1.msra.mxu0 0.0
  %245 = vmatprep.subr.mxu0 0.0
  %246 = vmatpush1.msra.mxu0 0.0
  %247 = vmatprep.subr.mxu0 0.0
  %248 = vmatpush1.msra.mxu0 0.0
  %249 = vmatprep.subr.mxu0 0.0
  %250 = vmatpush1.msra.mxu0 0.0
  %251 = vmatprep.subr.mxu0 0.0
  %252 = vmatpush1.msra.mxu0 0.0
  %253 = vmatprep.subr.mxu0 0.0
  %254 = vmatpush1.msra.mxu0 0.0
  %255 = vmatprep.subr.mxu0 0.0
  %256 = vmatpush1.msra.mxu0 0.0
  %257 = vmatprep.subr.mxu0 0.0
  %258 = vmatpush1.msra.mxu0 0.0
  %259 = vmatprep.subr.mxu0 0.0
  %260 = vmatpush1.msra.mxu0 0.0
  %261 = vmatprep.subr.mxu0 0.0
  %262 = vmatpush1.msra.mxu0 0.0
  %263 = vmatprep.subr.mxu0 0.0
  %264 = vmatpush1.msra.mxu0 0.0
  %265 = vmatprep.mubr.f32.mxu0 0.0
  %266 = vmatmul.mubr.f32.gmra.mrb[0].mxu0 %v57
  %v267 = vpop.f32.mrb[0].mxu0
  %v268 = vadd.f32 0.0, %v267
  %v269 = vpop.f32.mrb[0].mxu0
  %v270 = vadd.f32 0.0, %v269
  %271 = vdwg.mxu0
  %272 = vrot.lane.b32.xlu0 %v11, 115
  %v273 = vpop.permute.xlu0 %272
  %274 = vrot.lane.b32.xlu0 %v12, 115
  %v275 = vpop.permute.xlu0 %274
  %276 = vrot.lane.b32.xlu0 %v13, 115
  %v277 = vpop.permute.xlu0 %276
  %278 = vrot.lane.b32.xlu0 %v14, 115
  %v279 = vpop.permute.xlu0 %278
  %280 = vrot.lane.b32.xlu0 %v15, 115
  %v281 = vpop.permute.xlu0 %280
  %282 = vrot.lane.b32.xlu0 %v16, 115
  %v283 = vpop.permute.xlu0 %282
  %284 = vrot.lane.b32.xlu0 %v17, 115
  %v285 = vpop.permute.xlu0 %284
  %vm286 = vcmask 941056
  %v287 = vsel %vm286, %v273, %v275
  %v288 = vsel %vm286, %v275, %v277
  %v289 = vsel %vm286, %v277, %v279
  %v290 = vsel %vm286, %v279, %v281
  %v291 = vsel %vm286, %v281, %v283
  %v292 = vsel %vm286, %v283, %v285
  %v300 = vsel %vm55, %v18, 0
  %302 = vmatprep.subr.mxu0 %v288
  %303 = vmatpush1.msra.mxu0 %v287
  %304 = vmatprep.subr.mxu0 0.0
  %305 = vmatpush1.msra.mxu0 0.0
  %306 = vmatprep.subr.mxu0 0.0
  %307 = vmatpush1.msra.mxu0 0.0
  %308 = vmatprep.subr.mxu0 0.0
  %309 = vmatpush1.msra.mxu0 0.0
  %310 = vmatprep.subr.mxu0 0.0
  %311 = vmatpush1.msra.mxu0 0.0
  %312 = vmatprep.subr.mxu0 0.0
  %313 = vmatpush1.msra.mxu0 0.0
  %314 = vmatprep.subr.mxu0 0.0
  %315 = vmatpush1.msra.mxu0 0.0
  %316 = vmatprep.subr.mxu0 0.0
  %317 = vmatpush1.msra.mxu0 0.0
  %318 = vmatprep.subr.mxu0 0.0
  %319 = vmatpush1.msra.mxu0 0.0
  %320 = vmatprep.subr.mxu0 0.0
  %321 = vmatpush1.msra.mxu0 0.0
  %322 = vmatprep.subr.mxu0 0.0
  %323 = vmatpush1.msra.mxu0 0.0
  %324 = vmatprep.subr.mxu0 0.0
  %325 = vmatpush1.msra.mxu0 0.0
  %326 = vmatprep.subr.mxu0 0.0
  %327 = vmatpush1.msra.mxu0 0.0
  %328 = vmatprep.subr.mxu0 0.0
  %329 = vmatpush1.msra.mxu0 0.0
  %330 = vmatprep.subr.mxu0 0.0
  %331 = vmatpush1.msra.mxu0 0.0
  %332 = vmatprep.subr.mxu0 0.0
  %333 = vmatpush1.msra.mxu0 0.0
  %334 = vmatprep.subr.mxu0 0.0
  %335 = vmatpush1.msra.mxu0 0.0
  %336 = vmatprep.subr.mxu0 0.0
  %337 = vmatpush1.msra.mxu0 0.0
  %338 = vmatprep.subr.mxu0 0.0
  %339 = vmatpush1.msra.mxu0 0.0
  %340 = vmatprep.subr.mxu0 0.0
  %341 = vmatpush1.msra.mxu0 0.0
  %342 = vmatprep.subr.mxu0 0.0
  %343 = vmatpush1.msra.mxu0 0.0
  %344 = vmatprep.subr.mxu0 0.0
  %345 = vmatpush1.msra.mxu0 0.0
  %346 = vmatprep.subr.mxu0 0.0
  %347 = vmatpush1.msra.mxu0 0.0
  %348 = vmatprep.subr.mxu0 0.0
  %349 = vmatpush1.msra.mxu0 0.0
  %350 = vmatprep.subr.mxu0 0.0
  %351 = vmatpush1.msra.mxu0 0.0
  %352 = vmatprep.subr.mxu0 0.0
  %353 = vmatpush1.msra.mxu0 0.0
  %354 = vmatprep.subr.mxu0 0.0
  %355 = vmatpush1.msra.mxu0 0.0
  %356 = vmatprep.subr.mxu0 0.0
  %357 = vmatpush1.msra.mxu0 0.0
  %358 = vmatprep.subr.mxu0 0.0
  %359 = vmatpush1.msra.mxu0 0.0
  %360 = vmatprep.subr.mxu0 0.0
  %361 = vmatpush1.msra.mxu0 0.0
  %362 = vmatprep.subr.mxu0 0.0
  %363 = vmatpush1.msra.mxu0 0.0
  %364 = vmatprep.subr.mxu0 0.0
  %365 = vmatpush1.msra.mxu0 0.0
  %366 = vmatprep.mubr.f32.mxu0 0.0
  %367 = vmatmul.mubr.f32.gmra.mrb[0].mxu0 %v300
  %v368 = vpop.f32.mrb[0].mxu0
  %v369 = vadd.f32 %v126, %v368
  %v370 = vpop.f32.mrb[0].mxu0
  %v371 = vadd.f32 %v128, %v370
  %372 = vdwg.mxu0
  %373 = vmatprep.subr.mxu0 %v290
  %374 = vmatpush1.msra.mxu0 %v289
  %375 = vmatprep.subr.mxu0 0.0
  %376 = vmatpush1.msra.mxu0 0.0
  %377 = vmatprep.subr.mxu0 0.0
  %378 = vmatpush1.msra.mxu0 0.0
  %379 = vmatprep.subr.mxu0 0.0
  %380 = vmatpush1.msra.mxu0 0.0
  %381 = vmatprep.subr.mxu0 0.0
  %382 = vmatpush1.msra.mxu0 0.0
  %383 = vmatprep.subr.mxu0 0.0
  %384 = vmatpush1.msra.mxu0 0.0
  %385 = vmatprep.subr.mxu0 0.0
  %386 = vmatpush1.msra.mxu0 0.0
  %387 = vmatprep.subr.mxu0 0.0
  %388 = vmatpush1.msra.mxu0 0.0
  %389 = vmatprep.subr.mxu0 0.0
  %390 = vmatpush1.msra.mxu0 0.0
  %391 = vmatprep.subr.mxu0 0.0
  %392 = vmatpush1.msra.mxu0 0.0
  %393 = vmatprep.subr.mxu0 0.0
  %394 = vmatpush1.msra.mxu0 0.0
  %395 = vmatprep.subr.mxu0 0.0
  %396 = vmatpush1.msra.mxu0 0.0
  %397 = vmatprep.subr.mxu0 0.0
  %398 = vmatpush1.msra.mxu0 0.0
  %399 = vmatprep.subr.mxu0 0.0
  %400 = vmatpush1.msra.mxu0 0.0
  %401 = vmatprep.subr.mxu0 0.0
  %402 = vmatpush1.msra.mxu0 0.0
  %403 = vmatprep.subr.mxu0 0.0
  %404 = vmatpush1.msra.mxu0 0.0
  %405 = vmatprep.subr.mxu0 0.0
  %406 = vmatpush1.msra.mxu0 0.0
  %407 = vmatprep.subr.mxu0 0.0
  %408 = vmatpush1.msra.mxu0 0.0
  %409 = vmatprep.subr.mxu0 0.0
  %410 = vmatpush1.msra.mxu0 0.0
  %411 = vmatprep.subr.mxu0 0.0
  %412 = vmatpush1.msra.mxu0 0.0
  %413 = vmatprep.subr.mxu0 0.0
  %414 = vmatpush1.msra.mxu0 0.0
  %415 = vmatprep.subr.mxu0 0.0
  %416 = vmatpush1.msra.mxu0 0.0
  %417 = vmatprep.subr.mxu0 0.0
  %418 = vmatpush1.msra.mxu0 0.0
  %419 = vmatprep.subr.mxu0 0.0
  %420 = vmatpush1.msra.mxu0 0.0
  %421 = vmatprep.subr.mxu0 0.0
  %422 = vmatpush1.msra.mxu0 0.0
  %423 = vmatprep.subr.mxu0 0.0
  %424 = vmatpush1.msra.mxu0 0.0
  %425 = vmatprep.subr.mxu0 0.0
  %426 = vmatpush1.msra.mxu0 0.0
  %427 = vmatprep.subr.mxu0 0.0
  %428 = vmatpush1.msra.mxu0 0.0
  %429 = vmatprep.subr.mxu0 0.0
  %430 = vmatpush1.msra.mxu0 0.0
  %431 = vmatprep.subr.mxu0 0.0
  %432 = vmatpush1.msra.mxu0 0.0
  %433 = vmatprep.subr.mxu0 0.0
  %434 = vmatpush1.msra.mxu0 0.0
  %435 = vmatprep.subr.mxu0 0.0
  %436 = vmatpush1.msra.mxu0 0.0
  %437 = vmatprep.mubr.f32.mxu0 0.0
  %438 = vmatmul.mubr.f32.gmra.mrb[0].mxu0 %v300
  %v439 = vpop.f32.mrb[0].mxu0
  %v440 = vadd.f32 %v197, %v439
  %v441 = vpop.f32.mrb[0].mxu0
  %v442 = vadd.f32 %v199, %v441
  %443 = vdwg.mxu0
  %444 = vmatprep.subr.mxu0 %v292
  %445 = vmatpush1.msra.mxu0 %v291
  %446 = vmatprep.subr.mxu0 0.0
  %447 = vmatpush1.msra.mxu0 0.0
  %448 = vmatprep.subr.mxu0 0.0
  %449 = vmatpush1.msra.mxu0 0.0
  %450 = vmatprep.subr.mxu0 0.0
  %451 = vmatpush1.msra.mxu0 0.0
  %452 = vmatprep.subr.mxu0 0.0
  %453 = vmatpush1.msra.mxu0 0.0
  %454 = vmatprep.subr.mxu0 0.0
  %455 = vmatpush1.msra.mxu0 0.0
  %456 = vmatprep.subr.mxu0 0.0
  %457 = vmatpush1.msra.mxu0 0.0
  %458 = vmatprep.subr.mxu0 0.0
  %459 = vmatpush1.msra.mxu0 0.0
  %460 = vmatprep.subr.mxu0 0.0
  %461 = vmatpush1.msra.mxu0 0.0
  %462 = vmatprep.subr.mxu0 0.0
  %463 = vmatpush1.msra.mxu0 0.0
  %464 = vmatprep.subr.mxu0 0.0
  %465 = vmatpush1.msra.mxu0 0.0
  %466 = vmatprep.subr.mxu0 0.0
  %467 = vmatpush1.msra.mxu0 0.0
  %468 = vmatprep.subr.mxu0 0.0
  %469 = vmatpush1.msra.mxu0 0.0
  %470 = vmatprep.subr.mxu0 0.0
  %471 = vmatpush1.msra.mxu0 0.0
  %472 = vmatprep.subr.mxu0 0.0
  %473 = vmatpush1.msra.mxu0 0.0
  %474 = vmatprep.subr.mxu0 0.0
  %475 = vmatpush1.msra.mxu0 0.0
  %476 = vmatprep.subr.mxu0 0.0
  %477 = vmatpush1.msra.mxu0 0.0
  %478 = vmatprep.subr.mxu0 0.0
  %479 = vmatpush1.msra.mxu0 0.0
  %480 = vmatprep.subr.mxu0 0.0
  %481 = vmatpush1.msra.mxu0 0.0
  %482 = vmatprep.subr.mxu0 0.0
  %483 = vmatpush1.msra.mxu0 0.0
  %484 = vmatprep.subr.mxu0 0.0
  %485 = vmatpush1.msra.mxu0 0.0
  %486 = vmatprep.subr.mxu0 0.0
  %487 = vmatpush1.msra.mxu0 0.0
  %488 = vmatprep.subr.mxu0 0.0
  %489 = vmatpush1.msra.mxu0 0.0
  %490 = vmatprep.subr.mxu0 0.0
  %491 = vmatpush1.msra.mxu0 0.0
  %492 = vmatprep.subr.mxu0 0.0
  %493 = vmatpush1.msra.mxu0 0.0
  %494 = vmatprep.subr.mxu0 0.0
  %495 = vmatpush1.msra.mxu0 0.0
  %496 = vmatprep.subr.mxu0 0.0
  %497 = vmatpush1.msra.mxu0 0.0
  %498 = vmatprep.subr.mxu0 0.0
  %499 = vmatpush1.msra.mxu0 0.0
  %500 = vmatprep.subr.mxu0 0.0
  %501 = vmatpush1.msra.mxu0 0.0
  %502 = vmatprep.subr.mxu0 0.0
  %503 = vmatpush1.msra.mxu0 0.0
  %504 = vmatprep.subr.mxu0 0.0
  %505 = vmatpush1.msra.mxu0 0.0
  %506 = vmatprep.subr.mxu0 0.0
  %507 = vmatpush1.msra.mxu0 0.0
  %508 = vmatprep.mubr.f32.mxu0 0.0
  %509 = vmatmul.mubr.f32.gmra.mrb[0].mxu0 %v300
  %v510 = vpop.f32.mrb[0].mxu0
  %v511 = vadd.f32 %v268, %v510
  %v512 = vpop.f32.mrb[0].mxu0
  %v513 = vadd.f32 %v270, %v512
  %514 = vdwg.mxu0
  %s515 = scalar_lea.vmem %s0, 16
  %v516 = vld [vmem:[%s515] sm:$0xff]
  %517 = vrot.lane.b32.xlu0 %v11, 113
  %v518 = vpop.permute.xlu0 %517
  %519 = vrot.lane.b32.xlu0 %v12, 113
  %v520 = vpop.permute.xlu0 %519
  %521 = vrot.lane.b32.xlu0 %v13, 113
  %v522 = vpop.permute.xlu0 %521
  %523 = vrot.lane.b32.xlu0 %v14, 113
  %v524 = vpop.permute.xlu0 %523
  %525 = vrot.lane.b32.xlu0 %v15, 113
  %v526 = vpop.permute.xlu0 %525
  %527 = vrot.lane.b32.xlu0 %v16, 113
  %v528 = vpop.permute.xlu0 %527
  %529 = vrot.lane.b32.xlu0 %v17, 113
  %v530 = vpop.permute.xlu0 %529
  %vm531 = vcmask 924672
  %v532 = vsel %vm531, %v518, %v520
  %v533 = vsel %vm531, %v520, %v522
  %v534 = vsel %vm531, %v522, %v524
  %v535 = vsel %vm531, %v524, %v526
  %v536 = vsel %vm531, %v526, %v528
  %v537 = vsel %vm531, %v528, %v530
  %v545 = vsel %vm55, %v516, 0
  %547 = vmatprep.subr.mxu0 %v533
  %548 = vmatpush1.msra.mxu0 %v532
  %549 = vmatprep.subr.mxu0 0.0
  %550 = vmatpush1.msra.mxu0 0.0
  %551 = vmatprep.subr.mxu0 0.0
  %552 = vmatpush1.msra.mxu0 0.0
  %553 = vmatprep.subr.mxu0 0.0
  %554 = vmatpush1.msra.mxu0 0.0
  %555 = vmatprep.subr.mxu0 0.0
  %556 = vmatpush1.msra.mxu0 0.0
  %557 = vmatprep.subr.mxu0 0.0
  %558 = vmatpush1.msra.mxu0 0.0
  %559 = vmatprep.subr.mxu0 0.0
  %560 = vmatpush1.msra.mxu0 0.0
  %561 = vmatprep.subr.mxu0 0.0
  %562 = vmatpush1.msra.mxu0 0.0
  %563 = vmatprep.subr.mxu0 0.0
  %564 = vmatpush1.msra.mxu0 0.0
  %565 = vmatprep.subr.mxu0 0.0
  %566 = vmatpush1.msra.mxu0 0.0
  %567 = vmatprep.subr.mxu0 0.0
  %568 = vmatpush1.msra.mxu0 0.0
  %569 = vmatprep.subr.mxu0 0.0
  %570 = vmatpush1.msra.mxu0 0.0
  %571 = vmatprep.subr.mxu0 0.0
  %572 = vmatpush1.msra.mxu0 0.0
  %573 = vmatprep.subr.mxu0 0.0
  %574 = vmatpush1.msra.mxu0 0.0
  %575 = vmatprep.subr.mxu0 0.0
  %576 = vmatpush1.msra.mxu0 0.0
  %577 = vmatprep.subr.mxu0 0.0
  %578 = vmatpush1.msra.mxu0 0.0
  %579 = vmatprep.subr.mxu0 0.0
  %580 = vmatpush1.msra.mxu0 0.0
  %581 = vmatprep.subr.mxu0 0.0
  %582 = vmatpush1.msra.mxu0 0.0
  %583 = vmatprep.subr.mxu0 0.0
  %584 = vmatpush1.msra.mxu0 0.0
  %585 = vmatprep.subr.mxu0 0.0
  %586 = vmatpush1.msra.mxu0 0.0
  %587 = vmatprep.subr.mxu0 0.0
  %588 = vmatpush1.msra.mxu0 0.0
  %589 = vmatprep.subr.mxu0 0.0
  %590 = vmatpush1.msra.mxu0 0.0
  %591 = vmatprep.subr.mxu0 0.0
  %592 = vmatpush1.msra.mxu0 0.0
  %593 = vmatprep.subr.mxu0 0.0
  %594 = vmatpush1.msra.mxu0 0.0
  %595 = vmatprep.subr.mxu0 0.0
  %596 = vmatpush1.msra.mxu0 0.0
  %597 = vmatprep.subr.mxu0 0.0
  %598 = vmatpush1.msra.mxu0 0.0
  %599 = vmatprep.subr.mxu0 0.0
  %600 = vmatpush1.msra.mxu0 0.0
  %601 = vmatprep.subr.mxu0 0.0
  %602 = vmatpush1.msra.mxu0 0.0
  %603 = vmatprep.subr.mxu0 0.0
  %604 = vmatpush1.msra.mxu0 0.0
  %605 = vmatprep.subr.mxu0 0.0
  %606 = vmatpush1.msra.mxu0 0.0
  %607 = vmatprep.subr.mxu0 0.0
  %608 = vmatpush1.msra.mxu0 0.0
  %609 = vmatprep.subr.mxu0 0.0
  %610 = vmatpush1.msra.mxu0 0.0
  %611 = vmatprep.mubr.f32.mxu0 0.0
  %612 = vmatmul.mubr.f32.gmra.mrb[0].mxu0 %v545
  %v613 = vpop.f32.mrb[0].mxu0
  %v614 = vadd.f32 0.0, %v613
  %v615 = vpop.f32.mrb[0].mxu0
  %v616 = vadd.f32 0.0, %v615
  %617 = vdwg.mxu0
  %618 = vmatprep.subr.mxu0 %v535
  %619 = vmatpush1.msra.mxu0 %v534
  %620 = vmatprep.subr.mxu0 0.0
  %621 = vmatpush1.msra.mxu0 0.0
  %622 = vmatprep.subr.mxu0 0.0
  %623 = vmatpush1.msra.mxu0 0.0
  %624 = vmatprep.subr.mxu0 0.0
  %625 = vmatpush1.msra.mxu0 0.0
  %626 = vmatprep.subr.mxu0 0.0
  %627 = vmatpush1.msra.mxu0 0.0
  %628 = vmatprep.subr.mxu0 0.0
  %629 = vmatpush1.msra.mxu0 0.0
  %630 = vmatprep.subr.mxu0 0.0
  %631 = vmatpush1.msra.mxu0 0.0
  %632 = vmatprep.subr.mxu0 0.0
  %633 = vmatpush1.msra.mxu0 0.0
  %634 = vmatprep.subr.mxu0 0.0
  %635 = vmatpush1.msra.mxu0 0.0
  %636 = vmatprep.subr.mxu0 0.0
  %637 = vmatpush1.msra.mxu0 0.0
  %638 = vmatprep.subr.mxu0 0.0
  %639 = vmatpush1.msra.mxu0 0.0
  %640 = vmatprep.subr.mxu0 0.0
  %641 = vmatpush1.msra.mxu0 0.0
  %642 = vmatprep.subr.mxu0 0.0
  %643 = vmatpush1.msra.mxu0 0.0
  %644 = vmatprep.subr.mxu0 0.0
  %645 = vmatpush1.msra.mxu0 0.0
  %646 = vmatprep.subr.mxu0 0.0
  %647 = vmatpush1.msra.mxu0 0.0
  %648 = vmatprep.subr.mxu0 0.0
  %649 = vmatpush1.msra.mxu0 0.0
  %650 = vmatprep.subr.mxu0 0.0
  %651 = vmatpush1.msra.mxu0 0.0
  %652 = vmatprep.subr.mxu0 0.0
  %653 = vmatpush1.msra.mxu0 0.0
  %654 = vmatprep.subr.mxu0 0.0
  %655 = vmatpush1.msra.mxu0 0.0
  %656 = vmatprep.subr.mxu0 0.0
  %657 = vmatpush1.msra.mxu0 0.0
  %658 = vmatprep.subr.mxu0 0.0
  %659 = vmatpush1.msra.mxu0 0.0
  %660 = vmatprep.subr.mxu0 0.0
  %661 = vmatpush1.msra.mxu0 0.0
  %662 = vmatprep.subr.mxu0 0.0
  %663 = vmatpush1.msra.mxu0 0.0
  %664 = vmatprep.subr.mxu0 0.0
  %665 = vmatpush1.msra.mxu0 0.0
  %666 = vmatprep.subr.mxu0 0.0
  %667 = vmatpush1.msra.mxu0 0.0
  %668 = vmatprep.subr.mxu0 0.0
  %669 = vmatpush1.msra.mxu0 0.0
  %670 = vmatprep.subr.mxu0 0.0
  %671 = vmatpush1.msra.mxu0 0.0
  %672 = vmatprep.subr.mxu0 0.0
  %673 = vmatpush1.msra.mxu0 0.0
  %674 = vmatprep.subr.mxu0 0.0
  %675 = vmatpush1.msra.mxu0 0.0
  %676 = vmatprep.subr.mxu0 0.0
  %677 = vmatpush1.msra.mxu0 0.0
  %678 = vmatprep.subr.mxu0 0.0
  %679 = vmatpush1.msra.mxu0 0.0
  %680 = vmatprep.subr.mxu0 0.0
  %681 = vmatpush1.msra.mxu0 0.0
  %682 = vmatprep.mubr.f32.mxu0 0.0
  %683 = vmatmul.mubr.f32.gmra.mrb[0].mxu0 %v545
  %v684 = vpop.f32.mrb[0].mxu0
  %v685 = vadd.f32 0.0, %v684
  %v686 = vpop.f32.mrb[0].mxu0
  %v687 = vadd.f32 0.0, %v686
  %688 = vdwg.mxu0
  %689 = vmatprep.subr.mxu0 %v537
  %690 = vmatpush1.msra.mxu0 %v536
  %691 = vmatprep.subr.mxu0 0.0
  %692 = vmatpush1.msra.mxu0 0.0
  %693 = vmatprep.subr.mxu0 0.0
  %694 = vmatpush1.msra.mxu0 0.0
  %695 = vmatprep.subr.mxu0 0.0
  %696 = vmatpush1.msra.mxu0 0.0
  %697 = vmatprep.subr.mxu0 0.0
  %698 = vmatpush1.msra.mxu0 0.0
  %699 = vmatprep.subr.mxu0 0.0
  %700 = vmatpush1.msra.mxu0 0.0
  %701 = vmatprep.subr.mxu0 0.0
  %702 = vmatpush1.msra.mxu0 0.0
  %703 = vmatprep.subr.mxu0 0.0
  %704 = vmatpush1.msra.mxu0 0.0
  %705 = vmatprep.subr.mxu0 0.0
  %706 = vmatpush1.msra.mxu0 0.0
  %707 = vmatprep.subr.mxu0 0.0
  %708 = vmatpush1.msra.mxu0 0.0
  %709 = vmatprep.subr.mxu0 0.0
  %710 = vmatpush1.msra.mxu0 0.0
  %711 = vmatprep.subr.mxu0 0.0
  %712 = vmatpush1.msra.mxu0 0.0
  %713 = vmatprep.subr.mxu0 0.0
  %714 = vmatpush1.msra.mxu0 0.0
  %715 = vmatprep.subr.mxu0 0.0
  %716 = vmatpush1.msra.mxu0 0.0
  %717 = vmatprep.subr.mxu0 0.0
  %718 = vmatpush1.msra.mxu0 0.0
  %719 = vmatprep.subr.mxu0 0.0
  %720 = vmatpush1.msra.mxu0 0.0
  %721 = vmatprep.subr.mxu0 0.0
  %722 = vmatpush1.msra.mxu0 0.0
  %723 = vmatprep.subr.mxu0 0.0
  %724 = vmatpush1.msra.mxu0 0.0
  %725 = vmatprep.subr.mxu0 0.0
  %726 = vmatpush1.msra.mxu0 0.0
  %727 = vmatprep.subr.mxu0 0.0
  %728 = vmatpush1.msra.mxu0 0.0
  %729 = vmatprep.subr.mxu0 0.0
  %730 = vmatpush1.msra.mxu0 0.0
  %731 = vmatprep.subr.mxu0 0.0
  %732 = vmatpush1.msra.mxu0 0.0
  %733 = vmatprep.subr.mxu0 0.0
  %734 = vmatpush1.msra.mxu0 0.0
  %735 = vmatprep.subr.mxu0 0.0
  %736 = vmatpush1.msra.mxu0 0.0
  %737 = vmatprep.subr.mxu0 0.0
  %738 = vmatpush1.msra.mxu0 0.0
  %739 = vmatprep.subr.mxu0 0.0
  %740 = vmatpush1.msra.mxu0 0.0
  %741 = vmatprep.subr.mxu0 0.0
  %742 = vmatpush1.msra.mxu0 0.0
  %743 = vmatprep.subr.mxu0 0.0
  %744 = vmatpush1.msra.mxu0 0.0
  %745 = vmatprep.subr.mxu0 0.0
  %746 = vmatpush1.msra.mxu0 0.0
  %747 = vmatprep.subr.mxu0 0.0
  %748 = vmatpush1.msra.mxu0 0.0
  %749 = vmatprep.subr.mxu0 0.0
  %750 = vmatpush1.msra.mxu0 0.0
  %751 = vmatprep.subr.mxu0 0.0
  %752 = vmatpush1.msra.mxu0 0.0
  %753 = vmatprep.mubr.f32.mxu0 0.0
  %754 = vmatmul.mubr.f32.gmra.mrb[0].mxu0 %v545
  %v755 = vpop.f32.mrb[0].mxu0
  %v756 = vadd.f32 0.0, %v755
  %v757 = vpop.f32.mrb[0].mxu0
  %v758 = vadd.f32 0.0, %v757
  %759 = vdwg.mxu0
  %v760 = vadd.f32 %v369, %v614
  %v761 = vadd.f32 %v371, %v616
  %v762 = vadd.f32 %v440, %v685
  %v763 = vadd.f32 %v442, %v687
  %v764 = vadd.f32 %v511, %v756
  %v765 = vadd.f32 %v513, %v758
  %s766 = scalar_lea.vmem %s0, 24
  %v767 = vld [vmem:[%s766] sm:$0xff]
  %768 = vrot.lane.b32.xlu0 %v11, 97
  %v769 = vpop.permute.xlu0 %768
  %770 = vrot.lane.b32.xlu0 %v12, 97
  %v771 = vpop.permute.xlu0 %770
  %772 = vrot.lane.b32.xlu0 %v13, 97
  %v773 = vpop.permute.xlu0 %772
  %774 = vrot.lane.b32.xlu0 %v14, 97
  %v775 = vpop.permute.xlu0 %774
  %776 = vrot.lane.b32.xlu0 %v15, 97
  %v777 = vpop.permute.xlu0 %776
  %778 = vrot.lane.b32.xlu0 %v16, 97
  %v779 = vpop.permute.xlu0 %778
  %780 = vrot.lane.b32.xlu0 %v17, 97
  %v781 = vpop.permute.xlu0 %780
  %vm782 = vcmask 793600
  %v783 = vsel %vm782, %v769, %v771
  %v784 = vsel %vm782, %v771, %v773
  %v785 = vsel %vm782, %v773, %v775
  %v786 = vsel %vm782, %v775, %v777
  %v787 = vsel %vm782, %v777, %v779
  %v788 = vsel %vm782, %v779, %v781
  %v796 = vsel %vm55, %v767, 0
  %798 = vmatprep.subr.mxu0 %v784
  %799 = vmatpush1.msra.mxu0 %v783
  %800 = vmatprep.subr.mxu0 0.0
  %801 = vmatpush1.msra.mxu0 0.0
  %802 = vmatprep.subr.mxu0 0.0
  %803 = vmatpush1.msra.mxu0 0.0
  %804 = vmatprep.subr.mxu0 0.0
  %805 = vmatpush1.msra.mxu0 0.0
  %806 = vmatprep.subr.mxu0 0.0
  %807 = vmatpush1.msra.mxu0 0.0
  %808 = vmatprep.subr.mxu0 0.0
  %809 = vmatpush1.msra.mxu0 0.0
  %810 = vmatprep.subr.mxu0 0.0
  %811 = vmatpush1.msra.mxu0 0.0
  %812 = vmatprep.subr.mxu0 0.0
  %813 = vmatpush1.msra.mxu0 0.0
  %814 = vmatprep.subr.mxu0 0.0
  %815 = vmatpush1.msra.mxu0 0.0
  %816 = vmatprep.subr.mxu0 0.0
  %817 = vmatpush1.msra.mxu0 0.0
  %818 = vmatprep.subr.mxu0 0.0
  %819 = vmatpush1.msra.mxu0 0.0
  %820 = vmatprep.subr.mxu0 0.0
  %821 = vmatpush1.msra.mxu0 0.0
  %822 = vmatprep.subr.mxu0 0.0
  %823 = vmatpush1.msra.mxu0 0.0
  %824 = vmatprep.subr.mxu0 0.0
  %825 = vmatpush1.msra.mxu0 0.0
  %826 = vmatprep.subr.mxu0 0.0
  %827 = vmatpush1.msra.mxu0 0.0
  %828 = vmatprep.subr.mxu0 0.0
  %829 = vmatpush1.msra.mxu0 0.0
  %830 = vmatprep.subr.mxu0 0.0
  %831 = vmatpush1.msra.mxu0 0.0
  %832 = vmatprep.subr.mxu0 0.0
  %833 = vmatpush1.msra.mxu0 0.0
  %834 = vmatprep.subr.mxu0 0.0
  %835 = vmatpush1.msra.mxu0 0.0
  %836 = vmatprep.subr.mxu0 0.0
  %837 = vmatpush1.msra.mxu0 0.0
  %838 = vmatprep.subr.mxu0 0.0
  %839 = vmatpush1.msra.mxu0 0.0
  %840 = vmatprep.subr.mxu0 0.0
  %841 = vmatpush1.msra.mxu0 0.0
  %842 = vmatprep.subr.mxu0 0.0
  %843 = vmatpush1.msra.mxu0 0.0
  %844 = vmatprep.subr.mxu0 0.0
  %845 = vmatpush1.msra.mxu0 0.0
  %846 = vmatprep.subr.mxu0 0.0
  %847 = vmatpush1.msra.mxu0 0.0
  %848 = vmatprep.subr.mxu0 0.0
  %849 = vmatpush1.msra.mxu0 0.0
  %850 = vmatprep.subr.mxu0 0.0
  %851 = vmatpush1.msra.mxu0 0.0
  %852 = vmatprep.subr.mxu0 0.0
  %853 = vmatpush1.msra.mxu0 0.0
  %854 = vmatprep.subr.mxu0 0.0
  %855 = vmatpush1.msra.mxu0 0.0
  %856 = vmatprep.subr.mxu0 0.0
  %857 = vmatpush1.msra.mxu0 0.0
  %858 = vmatprep.subr.mxu0 0.0
  %859 = vmatpush1.msra.mxu0 0.0
  %860 = vmatprep.subr.mxu0 0.0
  %861 = vmatpush1.msra.mxu0 0.0
  %862 = vmatprep.mubr.f32.mxu0 0.0
  %863 = vmatmul.mubr.f32.gmra.mrb[0].mxu0 %v796
  %v864 = vpop.f32.mrb[0].mxu0
  %v865 = vadd.f32 0.0, %v864
  %v866 = vpop.f32.mrb[0].mxu0
  %v867 = vadd.f32 0.0, %v866
  %868 = vdwg.mxu0
  %869 = vmatprep.subr.mxu0 %v786
  %870 = vmatpush1.msra.mxu0 %v785
  %871 = vmatprep.subr.mxu0 0.0
  %872 = vmatpush1.msra.mxu0 0.0
  %873 = vmatprep.subr.mxu0 0.0
  %874 = vmatpush1.msra.mxu0 0.0
  %875 = vmatprep.subr.mxu0 0.0
  %876 = vmatpush1.msra.mxu0 0.0
  %877 = vmatprep.subr.mxu0 0.0
  %878 = vmatpush1.msra.mxu0 0.0
  %879 = vmatprep.subr.mxu0 0.0
  %880 = vmatpush1.msra.mxu0 0.0
  %881 = vmatprep.subr.mxu0 0.0
  %882 = vmatpush1.msra.mxu0 0.0
  %883 = vmatprep.subr.mxu0 0.0
  %884 = vmatpush1.msra.mxu0 0.0
  %885 = vmatprep.subr.mxu0 0.0
  %886 = vmatpush1.msra.mxu0 0.0
  %887 = vmatprep.subr.mxu0 0.0
  %888 = vmatpush1.msra.mxu0 0.0
  %889 = vmatprep.subr.mxu0 0.0
  %890 = vmatpush1.msra.mxu0 0.0
  %891 = vmatprep.subr.mxu0 0.0
  %892 = vmatpush1.msra.mxu0 0.0
  %893 = vmatprep.subr.mxu0 0.0
  %894 = vmatpush1.msra.mxu0 0.0
  %895 = vmatprep.subr.mxu0 0.0
  %896 = vmatpush1.msra.mxu0 0.0
  %897 = vmatprep.subr.mxu0 0.0
  %898 = vmatpush1.msra.mxu0 0.0
  %899 = vmatprep.subr.mxu0 0.0
  %900 = vmatpush1.msra.mxu0 0.0
  %901 = vmatprep.subr.mxu0 0.0
  %902 = vmatpush1.msra.mxu0 0.0
  %903 = vmatprep.subr.mxu0 0.0
  %904 = vmatpush1.msra.mxu0 0.0
  %905 = vmatprep.subr.mxu0 0.0
  %906 = vmatpush1.msra.mxu0 0.0
  %907 = vmatprep.subr.mxu0 0.0
  %908 = vmatpush1.msra.mxu0 0.0
  %909 = vmatprep.subr.mxu0 0.0
  %910 = vmatpush1.msra.mxu0 0.0
  %911 = vmatprep.subr.mxu0 0.0
  %912 = vmatpush1.msra.mxu0 0.0
  %913 = vmatprep.subr.mxu0 0.0
  %914 = vmatpush1.msra.mxu0 0.0
  %915 = vmatprep.subr.mxu0 0.0
  %916 = vmatpush1.msra.mxu0 0.0
  %917 = vmatprep.subr.mxu0 0.0
  %918 = vmatpush1.msra.mxu0 0.0
  %919 = vmatprep.subr.mxu0 0.0
  %920 = vmatpush1.msra.mxu0 0.0
  %921 = vmatprep.subr.mxu0 0.0
  %922 = vmatpush1.msra.mxu0 0.0
  %923 = vmatprep.subr.mxu0 0.0
  %924 = vmatpush1.msra.mxu0 0.0
  %925 = vmatprep.subr.mxu0 0.0
  %926 = vmatpush1.msra.mxu0 0.0
  %927 = vmatprep.subr.mxu0 0.0
  %928 = vmatpush1.msra.mxu0 0.0
  %929 = vmatprep.subr.mxu0 0.0
  %930 = vmatpush1.msra.mxu0 0.0
  %931 = vmatprep.subr.mxu0 0.0
  %932 = vmatpush1.msra.mxu0 0.0
  %933 = vmatprep.mubr.f32.mxu0 0.0
  %934 = vmatmul.mubr.f32.gmra.mrb[0].mxu0 %v796
  %v935 = vpop.f32.mrb[0].mxu0
  %v936 = vadd.f32 0.0, %v935
  %v937 = vpop.f32.mrb[0].mxu0
  %v938 = vadd.f32 0.0, %v937
  %939 = vdwg.mxu0
  %940 = vmatprep.subr.mxu0 %v788
  %941 = vmatpush1.msra.mxu0 %v787
  %942 = vmatprep.subr.mxu0 0.0
  %943 = vmatpush1.msra.mxu0 0.0
  %944 = vmatprep.subr.mxu0 0.0
  %945 = vmatpush1.msra.mxu0 0.0
  %946 = vmatprep.subr.mxu0 0.0
  %947 = vmatpush1.msra.mxu0 0.0
  %948 = vmatprep.subr.mxu0 0.0
  %949 = vmatpush1.msra.mxu0 0.0
  %950 = vmatprep.subr.mxu0 0.0
  %951 = vmatpush1.msra.mxu0 0.0
  %952 = vmatprep.subr.mxu0 0.0
  %953 = vmatpush1.msra.mxu0 0.0
  %954 = vmatprep.subr.mxu0 0.0
  %955 = vmatpush1.msra.mxu0 0.0
  %956 = vmatprep.subr.mxu0 0.0
  %957 = vmatpush1.msra.mxu0 0.0
  %958 = vmatprep.subr.mxu0 0.0
  %959 = vmatpush1.msra.mxu0 0.0
  %960 = vmatprep.subr.mxu0 0.0
  %961 = vmatpush1.msra.mxu0 0.0
  %962 = vmatprep.subr.mxu0 0.0
  %963 = vmatpush1.msra.mxu0 0.0
  %964 = vmatprep.subr.mxu0 0.0
  %965 = vmatpush1.msra.mxu0 0.0
  %966 = vmatprep.subr.mxu0 0.0
  %967 = vmatpush1.msra.mxu0 0.0
  %968 = vmatprep.subr.mxu0 0.0
  %969 = vmatpush1.msra.mxu0 0.0
  %970 = vmatprep.subr.mxu0 0.0
  %971 = vmatpush1.msra.mxu0 0.0
  %972 = vmatprep.subr.mxu0 0.0
  %973 = vmatpush1.msra.mxu0 0.0
  %974 = vmatprep.subr.mxu0 0.0
  %975 = vmatpush1.msra.mxu0 0.0
  %976 = vmatprep.subr.mxu0 0.0
  %977 = vmatpush1.msra.mxu0 0.0
  %978 = vmatprep.subr.mxu0 0.0
  %979 = vmatpush1.msra.mxu0 0.0
  %980 = vmatprep.subr.mxu0 0.0
  %981 = vmatpush1.msra.mxu0 0.0
  %982 = vmatprep.subr.mxu0 0.0
  %983 = vmatpush1.msra.mxu0 0.0
  %984 = vmatprep.subr.mxu0 0.0
  %985 = vmatpush1.msra.mxu0 0.0
  %986 = vmatprep.subr.mxu0 0.0
  %987 = vmatpush1.msra.mxu0 0.0
  %988 = vmatprep.subr.mxu0 0.0
  %989 = vmatpush1.msra.mxu0 0.0
  %990 = vmatprep.subr.mxu0 0.0
  %991 = vmatpush1.msra.mxu0 0.0
  %992 = vmatprep.subr.mxu0 0.0
  %993 = vmatpush1.msra.mxu0 0.0
  %994 = vmatprep.subr.mxu0 0.0
  %995 = vmatpush1.msra.mxu0 0.0
  %996 = vmatprep.subr.mxu0 0.0
  %997 = vmatpush1.msra.mxu0 0.0
  %998 = vmatprep.subr.mxu0 0.0
  %999 = vmatpush1.msra.mxu0 0.0
  %1000 = vmatprep.subr.mxu0 0.0
  %1001 = vmatpush1.msra.mxu0 0.0
  %1002 = vmatprep.subr.mxu0 0.0
  %1003 = vmatpush1.msra.mxu0 0.0
  %1004 = vmatprep.mubr.f32.mxu0 0.0
  %1005 = vmatmul.mubr.f32.gmra.mrb[0].mxu0 %v796
  %v1006 = vpop.f32.mrb[0].mxu0
  %v1007 = vadd.f32 0.0, %v1006
  %v1008 = vpop.f32.mrb[0].mxu0
  %v1009 = vadd.f32 0.0, %v1008
  %1010 = vdwg.mxu0
  %v1011 = vadd.f32 %v760, %v865
  %v1012 = vadd.f32 %v761, %v867
  %v1013 = vadd.f32 %v762, %v936
  %v1014 = vadd.f32 %v763, %v938
  %v1015 = vadd.f32 %v764, %v1007
  %v1016 = vadd.f32 %v765, %v1009
  %s1017 = scalar_lea.vmem %s0, 32
  %v1018 = vld [vmem:[%s1017] sm:$0xff]
  %1019 = vrot.lane.b32.xlu0 %v11, 96
  %v1020 = vpop.permute.xlu0 %1019
  %1021 = vrot.lane.b32.xlu0 %v12, 96
  %v1022 = vpop.permute.xlu0 %1021
  %1023 = vrot.lane.b32.xlu0 %v13, 96
  %v1024 = vpop.permute.xlu0 %1023
  %1025 = vrot.lane.b32.xlu0 %v14, 96
  %v1026 = vpop.permute.xlu0 %1025
  %1027 = vrot.lane.b32.xlu0 %v15, 96
  %v1028 = vpop.permute.xlu0 %1027
  %1029 = vrot.lane.b32.xlu0 %v16, 96
  %v1030 = vpop.permute.xlu0 %1029
  %1031 = vrot.lane.b32.xlu0 %v17, 96
  %v1032 = vpop.permute.xlu0 %1031
  %vm1033 = vcmask 785408
  %v1034 = vsel %vm1033, %v1020, %v1022
  %v1035 = vsel %vm1033, %v1022, %v1024
  %v1036 = vsel %vm1033, %v1024, %v1026
  %v1037 = vsel %vm1033, %v1026, %v1028
  %v1038 = vsel %vm1033, %v1028, %v1030
  %v1039 = vsel %vm1033, %v1030, %v1032
  %v1047 = vsel %vm55, %v1018, 0
  %1049 = vmatprep.subr.mxu0 %v1035
  %1050 = vmatpush1.msra.mxu0 %v1034
  %1051 = vmatprep.subr.mxu0 0.0
  %1052 = vmatpush1.msra.mxu0 0.0
  %1053 = vmatprep.subr.mxu0 0.0
  %1054 = vmatpush1.msra.mxu0 0.0
  %1055 = vmatprep.subr.mxu0 0.0
  %1056 = vmatpush1.msra.mxu0 0.0
  %1057 = vmatprep.subr.mxu0 0.0
  %1058 = vmatpush1.msra.mxu0 0.0
  %1059 = vmatprep.subr.mxu0 0.0
  %1060 = vmatpush1.msra.mxu0 0.0
  %1061 = vmatprep.subr.mxu0 0.0
  %1062 = vmatpush1.msra.mxu0 0.0
  %1063 = vmatprep.subr.mxu0 0.0
  %1064 = vmatpush1.msra.mxu0 0.0
  %1065 = vmatprep.subr.mxu0 0.0
  %1066 = vmatpush1.msra.mxu0 0.0
  %1067 = vmatprep.subr.mxu0 0.0
  %1068 = vmatpush1.msra.mxu0 0.0
  %1069 = vmatprep.subr.mxu0 0.0
  %1070 = vmatpush1.msra.mxu0 0.0
  %1071 = vmatprep.subr.mxu0 0.0
  %1072 = vmatpush1.msra.mxu0 0.0
  %1073 = vmatprep.subr.mxu0 0.0
  %1074 = vmatpush1.msra.mxu0 0.0
  %1075 = vmatprep.subr.mxu0 0.0
  %1076 = vmatpush1.msra.mxu0 0.0
  %1077 = vmatprep.subr.mxu0 0.0
  %1078 = vmatpush1.msra.mxu0 0.0
  %1079 = vmatprep.subr.mxu0 0.0
  %1080 = vmatpush1.msra.mxu0 0.0
  %1081 = vmatprep.subr.mxu0 0.0
  %1082 = vmatpush1.msra.mxu0 0.0
  %1083 = vmatprep.subr.mxu0 0.0
  %1084 = vmatpush1.msra.mxu0 0.0
  %1085 = vmatprep.subr.mxu0 0.0
  %1086 = vmatpush1.msra.mxu0 0.0
  %1087 = vmatprep.subr.mxu0 0.0
  %1088 = vmatpush1.msra.mxu0 0.0
  %1089 = vmatprep.subr.mxu0 0.0
  %1090 = vmatpush1.msra.mxu0 0.0
  %1091 = vmatprep.subr.mxu0 0.0
  %1092 = vmatpush1.msra.mxu0 0.0
  %1093 = vmatprep.subr.mxu0 0.0
  %1094 = vmatpush1.msra.mxu0 0.0
  %1095 = vmatprep.subr.mxu0 0.0
  %1096 = vmatpush1.msra.mxu0 0.0
  %1097 = vmatprep.subr.mxu0 0.0
  %1098 = vmatpush1.msra.mxu0 0.0
  %1099 = vmatprep.subr.mxu0 0.0
  %1100 = vmatpush1.msra.mxu0 0.0
  %1101 = vmatprep.subr.mxu0 0.0
  %1102 = vmatpush1.msra.mxu0 0.0
  %1103 = vmatprep.subr.mxu0 0.0
  %1104 = vmatpush1.msra.mxu0 0.0
  %1105 = vmatprep.subr.mxu0 0.0
  %1106 = vmatpush1.msra.mxu0 0.0
  %1107 = vmatprep.subr.mxu0 0.0
  %1108 = vmatpush1.msra.mxu0 0.0
  %1109 = vmatprep.subr.mxu0 0.0
  %1110 = vmatpush1.msra.mxu0 0.0
  %1111 = vmatprep.subr.mxu0 0.0
  %1112 = vmatpush1.msra.mxu0 0.0
  %1113 = vmatprep.mubr.f32.mxu0 0.0
  %1114 = vmatmul.mubr.f32.gmra.mrb[0].mxu0 %v1047
  %v1115 = vpop.f32.mrb[0].mxu0
  %v1116 = vadd.f32 0.0, %v1115
  %v1117 = vpop.f32.mrb[0].mxu0
  %v1118 = vadd.f32 0.0, %v1117
  %1119 = vdwg.mxu0
  %1120 = vmatprep.subr.mxu0 %v1037
  %1121 = vmatpush1.msra.mxu0 %v1036
  %1122 = vmatprep.subr.mxu0 0.0
  %1123 = vmatpush1.msra.mxu0 0.0
  %1124 = vmatprep.subr.mxu0 0.0
  %1125 = vmatpush1.msra.mxu0 0.0
  %1126 = vmatprep.subr.mxu0 0.0
  %1127 = vmatpush1.msra.mxu0 0.0
  %1128 = vmatprep.subr.mxu0 0.0
  %1129 = vmatpush1.msra.mxu0 0.0
  %1130 = vmatprep.subr.mxu0 0.0
  %1131 = vmatpush1.msra.mxu0 0.0
  %1132 = vmatprep.subr.mxu0 0.0
  %1133 = vmatpush1.msra.mxu0 0.0
  %1134 = vmatprep.subr.mxu0 0.0
  %1135 = vmatpush1.msra.mxu0 0.0
  %1136 = vmatprep.subr.mxu0 0.0
  %1137 = vmatpush1.msra.mxu0 0.0
  %1138 = vmatprep.subr.mxu0 0.0
  %1139 = vmatpush1.msra.mxu0 0.0
  %1140 = vmatprep.subr.mxu0 0.0
  %1141 = vmatpush1.msra.mxu0 0.0
  %1142 = vmatprep.subr.mxu0 0.0
  %1143 = vmatpush1.msra.mxu0 0.0
  %1144 = vmatprep.subr.mxu0 0.0
  %1145 = vmatpush1.msra.mxu0 0.0
  %1146 = vmatprep.subr.mxu0 0.0
  %1147 = vmatpush1.msra.mxu0 0.0
  %1148 = vmatprep.subr.mxu0 0.0
  %1149 = vmatpush1.msra.mxu0 0.0
  %1150 = vmatprep.subr.mxu0 0.0
  %1151 = vmatpush1.msra.mxu0 0.0
  %1152 = vmatprep.subr.mxu0 0.0
  %1153 = vmatpush1.msra.mxu0 0.0
  %1154 = vmatprep.subr.mxu0 0.0
  %1155 = vmatpush1.msra.mxu0 0.0
  %1156 = vmatprep.subr.mxu0 0.0
  %1157 = vmatpush1.msra.mxu0 0.0
  %1158 = vmatprep.subr.mxu0 0.0
  %1159 = vmatpush1.msra.mxu0 0.0
  %1160 = vmatprep.subr.mxu0 0.0
  %1161 = vmatpush1.msra.mxu0 0.0
  %1162 = vmatprep.subr.mxu0 0.0
  %1163 = vmatpush1.msra.mxu0 0.0
  %1164 = vmatprep.subr.mxu0 0.0
  %1165 = vmatpush1.msra.mxu0 0.0
  %1166 = vmatprep.subr.mxu0 0.0
  %1167 = vmatpush1.msra.mxu0 0.0
  %1168 = vmatprep.subr.mxu0 0.0
  %1169 = vmatpush1.msra.mxu0 0.0
  %1170 = vmatprep.subr.mxu0 0.0
  %1171 = vmatpush1.msra.mxu0 0.0
  %1172 = vmatprep.subr.mxu0 0.0
  %1173 = vmatpush1.msra.mxu0 0.0
  %1174 = vmatprep.subr.mxu0 0.0
  %1175 = vmatpush1.msra.mxu0 0.0
  %1176 = vmatprep.subr.mxu0 0.0
  %1177 = vmatpush1.msra.mxu0 0.0
  %1178 = vmatprep.subr.mxu0 0.0
  %1179 = vmatpush1.msra.mxu0 0.0
  %1180 = vmatprep.subr.mxu0 0.0
  %1181 = vmatpush1.msra.mxu0 0.0
  %1182 = vmatprep.subr.mxu0 0.0
  %1183 = vmatpush1.msra.mxu0 0.0
  %1184 = vmatprep.mubr.f32.mxu0 0.0
  %1185 = vmatmul.mubr.f32.gmra.mrb[0].mxu0 %v1047
  %v1186 = vpop.f32.mrb[0].mxu0
  %v1187 = vadd.f32 0.0, %v1186
  %v1188 = vpop.f32.mrb[0].mxu0
  %v1189 = vadd.f32 0.0, %v1188
  %1190 = vdwg.mxu0
  %1191 = vmatprep.subr.mxu0 %v1039
  %1192 = vmatpush1.msra.mxu0 %v1038
  %1193 = vmatprep.subr.mxu0 0.0
  %1194 = vmatpush1.msra.mxu0 0.0
  %1195 = vmatprep.subr.mxu0 0.0
  %1196 = vmatpush1.msra.mxu0 0.0
  %1197 = vmatprep.subr.mxu0 0.0
  %1198 = vmatpush1.msra.mxu0 0.0
  %1199 = vmatprep.subr.mxu0 0.0
  %1200 = vmatpush1.msra.mxu0 0.0
  %1201 = vmatprep.subr.mxu0 0.0
  %1202 = vmatpush1.msra.mxu0 0.0
  %1203 = vmatprep.subr.mxu0 0.0
  %1204 = vmatpush1.msra.mxu0 0.0
  %1205 = vmatprep.subr.mxu0 0.0
  %1206 = vmatpush1.msra.mxu0 0.0
  %1207 = vmatprep.subr.mxu0 0.0
  %1208 = vmatpush1.msra.mxu0 0.0
  %1209 = vmatprep.subr.mxu0 0.0
  %1210 = vmatpush1.msra.mxu0 0.0
  %1211 = vmatprep.subr.mxu0 0.0
  %1212 = vmatpush1.msra.mxu0 0.0
  %1213 = vmatprep.subr.mxu0 0.0
  %1214 = vmatpush1.msra.mxu0 0.0
  %1215 = vmatprep.subr.mxu0 0.0
  %1216 = vmatpush1.msra.mxu0 0.0
  %1217 = vmatprep.subr.mxu0 0.0
  %1218 = vmatpush1.msra.mxu0 0.0
  %1219 = vmatprep.subr.mxu0 0.0
  %1220 = vmatpush1.msra.mxu0 0.0
  %1221 = vmatprep.subr.mxu0 0.0
  %1222 = vmatpush1.msra.mxu0 0.0
  %1223 = vmatprep.subr.mxu0 0.0
  %1224 = vmatpush1.msra.mxu0 0.0
  %1225 = vmatprep.subr.mxu0 0.0
  %1226 = vmatpush1.msra.mxu0 0.0
  %1227 = vmatprep.subr.mxu0 0.0
  %1228 = vmatpush1.msra.mxu0 0.0
  %1229 = vmatprep.subr.mxu0 0.0
  %1230 = vmatpush1.msra.mxu0 0.0
  %1231 = vmatprep.subr.mxu0 0.0
  %1232 = vmatpush1.msra.mxu0 0.0
  %1233 = vmatprep.subr.mxu0 0.0
  %1234 = vmatpush1.msra.mxu0 0.0
  %1235 = vmatprep.subr.mxu0 0.0
  %1236 = vmatpush1.msra.mxu0 0.0
  %1237 = vmatprep.subr.mxu0 0.0
  %1238 = vmatpush1.msra.mxu0 0.0
  %1239 = vmatprep.subr.mxu0 0.0
  %1240 = vmatpush1.msra.mxu0 0.0
  %1241 = vmatprep.subr.mxu0 0.0
  %1242 = vmatpush1.msra.mxu0 0.0
  %1243 = vmatprep.subr.mxu0 0.0
  %1244 = vmatpush1.msra.mxu0 0.0
  %1245 = vmatprep.subr.mxu0 0.0
  %1246 = vmatpush1.msra.mxu0 0.0
  %1247 = vmatprep.subr.mxu0 0.0
  %1248 = vmatpush1.msra.mxu0 0.0
  %1249 = vmatprep.subr.mxu0 0.0
  %1250 = vmatpush1.msra.mxu0 0.0
  %1251 = vmatprep.subr.mxu0 0.0
  %1252 = vmatpush1.msra.mxu0 0.0
  %1253 = vmatprep.subr.mxu0 0.0
  %1254 = vmatpush1.msra.mxu0 0.0
  %1255 = vmatprep.mubr.f32.mxu0 0.0
  %1256 = vmatmul.mubr.f32.gmra.mrb[0].mxu0 %v1047
  %v1257 = vpop.f32.mrb[0].mxu0
  %v1258 = vadd.f32 0.0, %v1257
  %v1259 = vpop.f32.mrb[0].mxu0
  %v1260 = vadd.f32 0.0, %v1259
  %1261 = vdwg.mxu0
  %v1262 = vadd.f32 %v1011, %v1116
  %v1263 = vadd.f32 %v1012, %v1118
  %v1264 = vadd.f32 %v1013, %v1187
  %v1265 = vadd.f32 %v1014, %v1189
  %v1266 = vadd.f32 %v1015, %v1258
  %v1267 = vadd.f32 %v1016, %v1260
  %s1268 = scalar_lea.vmem %s0, 40
  %v1269 = vld [vmem:[%s1268] sm:$0xff]
  %1270 = vrot.lane.b32.xlu0 %v11, 95
  %v1271 = vpop.permute.xlu0 %1270
  %1272 = vrot.lane.b32.xlu0 %v12, 95
  %v1273 = vpop.permute.xlu0 %1272
  %1274 = vrot.lane.b32.xlu0 %v13, 95
  %v1275 = vpop.permute.xlu0 %1274
  %1276 = vrot.lane.b32.xlu0 %v14, 95
  %v1277 = vpop.permute.xlu0 %1276
  %1278 = vrot.lane.b32.xlu0 %v15, 95
  %v1279 = vpop.permute.xlu0 %1278
  %1280 = vrot.lane.b32.xlu0 %v16, 95
  %v1281 = vpop.permute.xlu0 %1280
  %1282 = vrot.lane.b32.xlu0 %v17, 95
  %v1283 = vpop.permute.xlu0 %1282
  %vm1284 = vcmask 777216
  %v1285 = vsel %vm1284, %v1271, %v1273
  %v1286 = vsel %vm1284, %v1273, %v1275
  %v1287 = vsel %vm1284, %v1275, %v1277
  %v1288 = vsel %vm1284, %v1277, %v1279
  %v1289 = vsel %vm1284, %v1279, %v1281
  %v1290 = vsel %vm1284, %v1281, %v1283
  %v1298 = vsel %vm55, %v1269, 0
  %1300 = vmatprep.subr.mxu0 %v1286
  %1301 = vmatpush1.msra.mxu0 %v1285
  %1302 = vmatprep.subr.mxu0 0.0
  %1303 = vmatpush1.msra.mxu0 0.0
  %1304 = vmatprep.subr.mxu0 0.0
  %1305 = vmatpush1.msra.mxu0 0.0
  %1306 = vmatprep.subr.mxu0 0.0
  %1307 = vmatpush1.msra.mxu0 0.0
  %1308 = vmatprep.subr.mxu0 0.0
  %1309 = vmatpush1.msra.mxu0 0.0
  %1310 = vmatprep.subr.mxu0 0.0
  %1311 = vmatpush1.msra.mxu0 0.0
  %1312 = vmatprep.subr.mxu0 0.0
  %1313 = vmatpush1.msra.mxu0 0.0
  %1314 = vmatprep.subr.mxu0 0.0
  %1315 = vmatpush1.msra.mxu0 0.0
  %1316 = vmatprep.subr.mxu0 0.0
  %1317 = vmatpush1.msra.mxu0 0.0
  %1318 = vmatprep.subr.mxu0 0.0
  %1319 = vmatpush1.msra.mxu0 0.0
  %1320 = vmatprep.subr.mxu0 0.0
  %1321 = vmatpush1.msra.mxu0 0.0
  %1322 = vmatprep.subr.mxu0 0.0
  %1323 = vmatpush1.msra.mxu0 0.0
  %1324 = vmatprep.subr.mxu0 0.0
  %1325 = vmatpush1.msra.mxu0 0.0
  %1326 = vmatprep.subr.mxu0 0.0
  %1327 = vmatpush1.msra.mxu0 0.0
  %1328 = vmatprep.subr.mxu0 0.0
  %1329 = vmatpush1.msra.mxu0 0.0
  %1330 = vmatprep.subr.mxu0 0.0
  %1331 = vmatpush1.msra.mxu0 0.0
  %1332 = vmatprep.subr.mxu0 0.0
  %1333 = vmatpush1.msra.mxu0 0.0
  %1334 = vmatprep.subr.mxu0 0.0
  %1335 = vmatpush1.msra.mxu0 0.0
  %1336 = vmatprep.subr.mxu0 0.0
  %1337 = vmatpush1.msra.mxu0 0.0
  %1338 = vmatprep.subr.mxu0 0.0
  %1339 = vmatpush1.msra.mxu0 0.0
  %1340 = vmatprep.subr.mxu0 0.0
  %1341 = vmatpush1.msra.mxu0 0.0
  %1342 = vmatprep.subr.mxu0 0.0
  %1343 = vmatpush1.msra.mxu0 0.0
  %1344 = vmatprep.subr.mxu0 0.0
  %1345 = vmatpush1.msra.mxu0 0.0
  %1346 = vmatprep.subr.mxu0 0.0
  %1347 = vmatpush1.msra.mxu0 0.0
  %1348 = vmatprep.subr.mxu0 0.0
  %1349 = vmatpush1.msra.mxu0 0.0
  %1350 = vmatprep.subr.mxu0 0.0
  %1351 = vmatpush1.msra.mxu0 0.0
  %1352 = vmatprep.subr.mxu0 0.0
  %1353 = vmatpush1.msra.mxu0 0.0
  %1354 = vmatprep.subr.mxu0 0.0
  %1355 = vmatpush1.msra.mxu0 0.0
  %1356 = vmatprep.subr.mxu0 0.0
  %1357 = vmatpush1.msra.mxu0 0.0
  %1358 = vmatprep.subr.mxu0 0.0
  %1359 = vmatpush1.msra.mxu0 0.0
  %1360 = vmatprep.subr.mxu0 0.0
  %1361 = vmatpush1.msra.mxu0 0.0
  %1362 = vmatprep.subr.mxu0 0.0
  %1363 = vmatpush1.msra.mxu0 0.0
  %1364 = vmatprep.mubr.f32.mxu0 0.0
  %1365 = vmatmul.mubr.f32.gmra.mrb[0].mxu0 %v1298
  %v1366 = vpop.f32.mrb[0].mxu0
  %v1367 = vadd.f32 0.0, %v1366
  %v1368 = vpop.f32.mrb[0].mxu0
  %v1369 = vadd.f32 0.0, %v1368
  %1370 = vdwg.mxu0
  %1371 = vmatprep.subr.mxu0 %v1288
  %1372 = vmatpush1.msra.mxu0 %v1287
  %1373 = vmatprep.subr.mxu0 0.0
  %1374 = vmatpush1.msra.mxu0 0.0
  %1375 = vmatprep.subr.mxu0 0.0
  %1376 = vmatpush1.msra.mxu0 0.0
  %1377 = vmatprep.subr.mxu0 0.0
  %1378 = vmatpush1.msra.mxu0 0.0
  %1379 = vmatprep.subr.mxu0 0.0
  %1380 = vmatpush1.msra.mxu0 0.0
  %1381 = vmatprep.subr.mxu0 0.0
  %1382 = vmatpush1.msra.mxu0 0.0
  %1383 = vmatprep.subr.mxu0 0.0
  %1384 = vmatpush1.msra.mxu0 0.0
  %1385 = vmatprep.subr.mxu0 0.0
  %1386 = vmatpush1.msra.mxu0 0.0
  %1387 = vmatprep.subr.mxu0 0.0
  %1388 = vmatpush1.msra.mxu0 0.0
  %1389 = vmatprep.subr.mxu0 0.0
  %1390 = vmatpush1.msra.mxu0 0.0
  %1391 = vmatprep.subr.mxu0 0.0
  %1392 = vmatpush1.msra.mxu0 0.0
  %1393 = vmatprep.subr.mxu0 0.0
  %1394 = vmatpush1.msra.mxu0 0.0
  %1395 = vmatprep.subr.mxu0 0.0
  %1396 = vmatpush1.msra.mxu0 0.0
  %1397 = vmatprep.subr.mxu0 0.0
  %1398 = vmatpush1.msra.mxu0 0.0
  %1399 = vmatprep.subr.mxu0 0.0
  %1400 = vmatpush1.msra.mxu0 0.0
  %1401 = vmatprep.subr.mxu0 0.0
  %1402 = vmatpush1.msra.mxu0 0.0
  %1403 = vmatprep.subr.mxu0 0.0
  %1404 = vmatpush1.msra.mxu0 0.0
  %1405 = vmatprep.subr.mxu0 0.0
  %1406 = vmatpush1.msra.mxu0 0.0
  %1407 = vmatprep.subr.mxu0 0.0
  %1408 = vmatpush1.msra.mxu0 0.0
  %1409 = vmatprep.subr.mxu0 0.0
  %1410 = vmatpush1.msra.mxu0 0.0
  %1411 = vmatprep.subr.mxu0 0.0
  %1412 = vmatpush1.msra.mxu0 0.0
  %1413 = vmatprep.subr.mxu0 0.0
  %1414 = vmatpush1.msra.mxu0 0.0
  %1415 = vmatprep.subr.mxu0 0.0
  %1416 = vmatpush1.msra.mxu0 0.0
  %1417 = vmatprep.subr.mxu0 0.0
  %1418 = vmatpush1.msra.mxu0 0.0
  %1419 = vmatprep.subr.mxu0 0.0
  %1420 = vmatpush1.msra.mxu0 0.0
  %1421 = vmatprep.subr.mxu0 0.0
  %1422 = vmatpush1.msra.mxu0 0.0
  %1423 = vmatprep.subr.mxu0 0.0
  %1424 = vmatpush1.msra.mxu0 0.0
  %1425 = vmatprep.subr.mxu0 0.0
  %1426 = vmatpush1.msra.mxu0 0.0
  %1427 = vmatprep.subr.mxu0 0.0
  %1428 = vmatpush1.msra.mxu0 0.0
  %1429 = vmatprep.subr.mxu0 0.0
  %1430 = vmatpush1.msra.mxu0 0.0
  %1431 = vmatprep.subr.mxu0 0.0
  %1432 = vmatpush1.msra.mxu0 0.0
  %1433 = vmatprep.subr.mxu0 0.0
  %1434 = vmatpush1.msra.mxu0 0.0
  %1435 = vmatprep.mubr.f32.mxu0 0.0
  %1436 = vmatmul.mubr.f32.gmra.mrb[0].mxu0 %v1298
  %v1437 = vpop.f32.mrb[0].mxu0
  %v1438 = vadd.f32 0.0, %v1437
  %v1439 = vpop.f32.mrb[0].mxu0
  %v1440 = vadd.f32 0.0, %v1439
  %1441 = vdwg.mxu0
  %1442 = vmatprep.subr.mxu0 %v1290
  %1443 = vmatpush1.msra.mxu0 %v1289
  %1444 = vmatprep.subr.mxu0 0.0
  %1445 = vmatpush1.msra.mxu0 0.0
  %1446 = vmatprep.subr.mxu0 0.0
  %1447 = vmatpush1.msra.mxu0 0.0
  %1448 = vmatprep.subr.mxu0 0.0
  %1449 = vmatpush1.msra.mxu0 0.0
  %1450 = vmatprep.subr.mxu0 0.0
  %1451 = vmatpush1.msra.mxu0 0.0
  %1452 = vmatprep.subr.mxu0 0.0
  %1453 = vmatpush1.msra.mxu0 0.0
  %1454 = vmatprep.subr.mxu0 0.0
  %1455 = vmatpush1.msra.mxu0 0.0
  %1456 = vmatprep.subr.mxu0 0.0
  %1457 = vmatpush1.msra.mxu0 0.0
  %1458 = vmatprep.subr.mxu0 0.0
  %1459 = vmatpush1.msra.mxu0 0.0
  %1460 = vmatprep.subr.mxu0 0.0
  %1461 = vmatpush1.msra.mxu0 0.0
  %1462 = vmatprep.subr.mxu0 0.0
  %1463 = vmatpush1.msra.mxu0 0.0
  %1464 = vmatprep.subr.mxu0 0.0
  %1465 = vmatpush1.msra.mxu0 0.0
  %1466 = vmatprep.subr.mxu0 0.0
  %1467 = vmatpush1.msra.mxu0 0.0
  %1468 = vmatprep.subr.mxu0 0.0
  %1469 = vmatpush1.msra.mxu0 0.0
  %1470 = vmatprep.subr.mxu0 0.0
  %1471 = vmatpush1.msra.mxu0 0.0
  %1472 = vmatprep.subr.mxu0 0.0
  %1473 = vmatpush1.msra.mxu0 0.0
  %1474 = vmatprep.subr.mxu0 0.0
  %1475 = vmatpush1.msra.mxu0 0.0
  %1476 = vmatprep.subr.mxu0 0.0
  %1477 = vmatpush1.msra.mxu0 0.0
  %1478 = vmatprep.subr.mxu0 0.0
  %1479 = vmatpush1.msra.mxu0 0.0
  %1480 = vmatprep.subr.mxu0 0.0
  %1481 = vmatpush1.msra.mxu0 0.0
  %1482 = vmatprep.subr.mxu0 0.0
  %1483 = vmatpush1.msra.mxu0 0.0
  %1484 = vmatprep.subr.mxu0 0.0
  %1485 = vmatpush1.msra.mxu0 0.0
  %1486 = vmatprep.subr.mxu0 0.0
  %1487 = vmatpush1.msra.mxu0 0.0
  %1488 = vmatprep.subr.mxu0 0.0
  %1489 = vmatpush1.msra.mxu0 0.0
  %1490 = vmatprep.subr.mxu0 0.0
  %1491 = vmatpush1.msra.mxu0 0.0
  %1492 = vmatprep.subr.mxu0 0.0
  %1493 = vmatpush1.msra.mxu0 0.0
  %1494 = vmatprep.subr.mxu0 0.0
  %1495 = vmatpush1.msra.mxu0 0.0
  %1496 = vmatprep.subr.mxu0 0.0
  %1497 = vmatpush1.msra.mxu0 0.0
  %1498 = vmatprep.subr.mxu0 0.0
  %1499 = vmatpush1.msra.mxu0 0.0
  %1500 = vmatprep.subr.mxu0 0.0
  %1501 = vmatpush1.msra.mxu0 0.0
  %1502 = vmatprep.subr.mxu0 0.0
  %1503 = vmatpush1.msra.mxu0 0.0
  %1504 = vmatprep.subr.mxu0 0.0
  %1505 = vmatpush1.msra.mxu0 0.0
  %1506 = vmatprep.mubr.f32.mxu0 0.0
  %1507 = vmatmul.mubr.f32.gmra.mrb[0].mxu0 %v1298
  %v1508 = vpop.f32.mrb[0].mxu0
  %v1509 = vadd.f32 0.0, %v1508
  %v1510 = vpop.f32.mrb[0].mxu0
  %v1511 = vadd.f32 0.0, %v1510
  %1512 = vdwg.mxu0
  %v1513 = vadd.f32 %v1262, %v1367
  %v1514 = vadd.f32 %v1263, %v1369
  %v1515 = vadd.f32 %v1264, %v1438
  %v1516 = vadd.f32 %v1265, %v1440
  %v1517 = vadd.f32 %v1266, %v1509
  %v1518 = vadd.f32 %v1267, %v1511
  %s1519 = scalar_lea.vmem %s0, 48
  %v1520 = vld [vmem:[%s1519] sm:$0xff]
  %1521 = vrot.lane.b32.xlu0 %v11, 79
  %v1522 = vpop.permute.xlu0 %1521
  %1523 = vrot.lane.b32.xlu0 %v12, 79
  %v1524 = vpop.permute.xlu0 %1523
  %1525 = vrot.lane.b32.xlu0 %v13, 79
  %v1526 = vpop.permute.xlu0 %1525
  %1527 = vrot.lane.b32.xlu0 %v14, 79
  %v1528 = vpop.permute.xlu0 %1527
  %1529 = vrot.lane.b32.xlu0 %v15, 79
  %v1530 = vpop.permute.xlu0 %1529
  %1531 = vrot.lane.b32.xlu0 %v16, 79
  %v1532 = vpop.permute.xlu0 %1531
  %1533 = vrot.lane.b32.xlu0 %v17, 79
  %v1534 = vpop.permute.xlu0 %1533
  %vm1535 = vcmask 646144
  %v1536 = vsel %vm1535, %v1522, %v1524
  %v1537 = vsel %vm1535, %v1524, %v1526
  %v1538 = vsel %vm1535, %v1526, %v1528
  %v1539 = vsel %vm1535, %v1528, %v1530
  %v1540 = vsel %vm1535, %v1530, %v1532
  %v1541 = vsel %vm1535, %v1532, %v1534
  %v1549 = vsel %vm55, %v1520, 0
  %1551 = vmatprep.subr.mxu0 %v1537
  %1552 = vmatpush1.msra.mxu0 %v1536
  %1553 = vmatprep.subr.mxu0 0.0
  %1554 = vmatpush1.msra.mxu0 0.0
  %1555 = vmatprep.subr.mxu0 0.0
  %1556 = vmatpush1.msra.mxu0 0.0
  %1557 = vmatprep.subr.mxu0 0.0
  %1558 = vmatpush1.msra.mxu0 0.0
  %1559 = vmatprep.subr.mxu0 0.0
  %1560 = vmatpush1.msra.mxu0 0.0
  %1561 = vmatprep.subr.mxu0 0.0
  %1562 = vmatpush1.msra.mxu0 0.0
  %1563 = vmatprep.subr.mxu0 0.0
  %1564 = vmatpush1.msra.mxu0 0.0
  %1565 = vmatprep.subr.mxu0 0.0
  %1566 = vmatpush1.msra.mxu0 0.0
  %1567 = vmatprep.subr.mxu0 0.0
  %1568 = vmatpush1.msra.mxu0 0.0
  %1569 = vmatprep.subr.mxu0 0.0
  %1570 = vmatpush1.msra.mxu0 0.0
  %1571 = vmatprep.subr.mxu0 0.0
  %1572 = vmatpush1.msra.mxu0 0.0
  %1573 = vmatprep.subr.mxu0 0.0
  %1574 = vmatpush1.msra.mxu0 0.0
  %1575 = vmatprep.subr.mxu0 0.0
  %1576 = vmatpush1.msra.mxu0 0.0
  %1577 = vmatprep.subr.mxu0 0.0
  %1578 = vmatpush1.msra.mxu0 0.0
  %1579 = vmatprep.subr.mxu0 0.0
  %1580 = vmatpush1.msra.mxu0 0.0
  %1581 = vmatprep.subr.mxu0 0.0
  %1582 = vmatpush1.msra.mxu0 0.0
  %1583 = vmatprep.subr.mxu0 0.0
  %1584 = vmatpush1.msra.mxu0 0.0
  %1585 = vmatprep.subr.mxu0 0.0
  %1586 = vmatpush1.msra.mxu0 0.0
  %1587 = vmatprep.subr.mxu0 0.0
  %1588 = vmatpush1.msra.mxu0 0.0
  %1589 = vmatprep.subr.mxu0 0.0
  %1590 = vmatpush1.msra.mxu0 0.0
  %1591 = vmatprep.subr.mxu0 0.0
  %1592 = vmatpush1.msra.mxu0 0.0
  %1593 = vmatprep.subr.mxu0 0.0
  %1594 = vmatpush1.msra.mxu0 0.0
  %1595 = vmatprep.subr.mxu0 0.0
  %1596 = vmatpush1.msra.mxu0 0.0
  %1597 = vmatprep.subr.mxu0 0.0
  %1598 = vmatpush1.msra.mxu0 0.0
  %1599 = vmatprep.subr.mxu0 0.0
  %1600 = vmatpush1.msra.mxu0 0.0
  %1601 = vmatprep.subr.mxu0 0.0
  %1602 = vmatpush1.msra.mxu0 0.0
  %1603 = vmatprep.subr.mxu0 0.0
  %1604 = vmatpush1.msra.mxu0 0.0
  %1605 = vmatprep.subr.mxu0 0.0
  %1606 = vmatpush1.msra.mxu0 0.0
  %1607 = vmatprep.subr.mxu0 0.0
  %1608 = vmatpush1.msra.mxu0 0.0
  %1609 = vmatprep.subr.mxu0 0.0
  %1610 = vmatpush1.msra.mxu0 0.0
  %1611 = vmatprep.subr.mxu0 0.0
  %1612 = vmatpush1.msra.mxu0 0.0
  %1613 = vmatprep.subr.mxu0 0.0
  %1614 = vmatpush1.msra.mxu0 0.0
  %1615 = vmatprep.mubr.f32.mxu0 0.0
  %1616 = vmatmul.mubr.f32.gmra.mrb[0].mxu0 %v1549
  %v1617 = vpop.f32.mrb[0].mxu0
  %v1618 = vadd.f32 0.0, %v1617
  %v1619 = vpop.f32.mrb[0].mxu0
  %v1620 = vadd.f32 0.0, %v1619
  %1621 = vdwg.mxu0
  %1622 = vmatprep.subr.mxu0 %v1539
  %1623 = vmatpush1.msra.mxu0 %v1538
  %1624 = vmatprep.subr.mxu0 0.0
  %1625 = vmatpush1.msra.mxu0 0.0
  %1626 = vmatprep.subr.mxu0 0.0
  %1627 = vmatpush1.msra.mxu0 0.0
  %1628 = vmatprep.subr.mxu0 0.0
  %1629 = vmatpush1.msra.mxu0 0.0
  %1630 = vmatprep.subr.mxu0 0.0
  %1631 = vmatpush1.msra.mxu0 0.0
  %1632 = vmatprep.subr.mxu0 0.0
  %1633 = vmatpush1.msra.mxu0 0.0
  %1634 = vmatprep.subr.mxu0 0.0
  %1635 = vmatpush1.msra.mxu0 0.0
  %1636 = vmatprep.subr.mxu0 0.0
  %1637 = vmatpush1.msra.mxu0 0.0
  %1638 = vmatprep.subr.mxu0 0.0
  %1639 = vmatpush1.msra.mxu0 0.0
  %1640 = vmatprep.subr.mxu0 0.0
  %1641 = vmatpush1.msra.mxu0 0.0
  %1642 = vmatprep.subr.mxu0 0.0
  %1643 = vmatpush1.msra.mxu0 0.0
  %1644 = vmatprep.subr.mxu0 0.0
  %1645 = vmatpush1.msra.mxu0 0.0
  %1646 = vmatprep.subr.mxu0 0.0
  %1647 = vmatpush1.msra.mxu0 0.0
  %1648 = vmatprep.subr.mxu0 0.0
  %1649 = vmatpush1.msra.mxu0 0.0
  %1650 = vmatprep.subr.mxu0 0.0
  %1651 = vmatpush1.msra.mxu0 0.0
  %1652 = vmatprep.subr.mxu0 0.0
  %1653 = vmatpush1.msra.mxu0 0.0
  %1654 = vmatprep.subr.mxu0 0.0
  %1655 = vmatpush1.msra.mxu0 0.0
  %1656 = vmatprep.subr.mxu0 0.0
  %1657 = vmatpush1.msra.mxu0 0.0
  %1658 = vmatprep.subr.mxu0 0.0
  %1659 = vmatpush1.msra.mxu0 0.0
  %1660 = vmatprep.subr.mxu0 0.0
  %1661 = vmatpush1.msra.mxu0 0.0
  %1662 = vmatprep.subr.mxu0 0.0
  %1663 = vmatpush1.msra.mxu0 0.0
  %1664 = vmatprep.subr.mxu0 0.0
  %1665 = vmatpush1.msra.mxu0 0.0
  %1666 = vmatprep.subr.mxu0 0.0
  %1667 = vmatpush1.msra.mxu0 0.0
  %1668 = vmatprep.subr.mxu0 0.0
  %1669 = vmatpush1.msra.mxu0 0.0
  %1670 = vmatprep.subr.mxu0 0.0
  %1671 = vmatpush1.msra.mxu0 0.0
  %1672 = vmatprep.subr.mxu0 0.0
  %1673 = vmatpush1.msra.mxu0 0.0
  %1674 = vmatprep.subr.mxu0 0.0
  %1675 = vmatpush1.msra.mxu0 0.0
  %1676 = vmatprep.subr.mxu0 0.0
  %1677 = vmatpush1.msra.mxu0 0.0
  %1678 = vmatprep.subr.mxu0 0.0
  %1679 = vmatpush1.msra.mxu0 0.0
  %1680 = vmatprep.subr.mxu0 0.0
  %1681 = vmatpush1.msra.mxu0 0.0
  %1682 = vmatprep.subr.mxu0 0.0
  %1683 = vmatpush1.msra.mxu0 0.0
  %1684 = vmatprep.subr.mxu0 0.0
  %1685 = vmatpush1.msra.mxu0 0.0
  %1686 = vmatprep.mubr.f32.mxu0 0.0
  %1687 = vmatmul.mubr.f32.gmra.mrb[0].mxu0 %v1549
  %v1688 = vpop.f32.mrb[0].mxu0
  %v1689 = vadd.f32 0.0, %v1688
  %v1690 = vpop.f32.mrb[0].mxu0
  %v1691 = vadd.f32 0.0, %v1690
  %1692 = vdwg.mxu0
  %1693 = vmatprep.subr.mxu0 %v1541
  %1694 = vmatpush1.msra.mxu0 %v1540
  %1695 = vmatprep.subr.mxu0 0.0
  %1696 = vmatpush1.msra.mxu0 0.0
  %1697 = vmatprep.subr.mxu0 0.0
  %1698 = vmatpush1.msra.mxu0 0.0
  %1699 = vmatprep.subr.mxu0 0.0
  %1700 = vmatpush1.msra.mxu0 0.0
  %1701 = vmatprep.subr.mxu0 0.0
  %1702 = vmatpush1.msra.mxu0 0.0
  %1703 = vmatprep.subr.mxu0 0.0
  %1704 = vmatpush1.msra.mxu0 0.0
  %1705 = vmatprep.subr.mxu0 0.0
  %1706 = vmatpush1.msra.mxu0 0.0
  %1707 = vmatprep.subr.mxu0 0.0
  %1708 = vmatpush1.msra.mxu0 0.0
  %1709 = vmatprep.subr.mxu0 0.0
  %1710 = vmatpush1.msra.mxu0 0.0
  %1711 = vmatprep.subr.mxu0 0.0
  %1712 = vmatpush1.msra.mxu0 0.0
  %1713 = vmatprep.subr.mxu0 0.0
  %1714 = vmatpush1.msra.mxu0 0.0
  %1715 = vmatprep.subr.mxu0 0.0
  %1716 = vmatpush1.msra.mxu0 0.0
  %1717 = vmatprep.subr.mxu0 0.0
  %1718 = vmatpush1.msra.mxu0 0.0
  %1719 = vmatprep.subr.mxu0 0.0
  %1720 = vmatpush1.msra.mxu0 0.0
  %1721 = vmatprep.subr.mxu0 0.0
  %1722 = vmatpush1.msra.mxu0 0.0
  %1723 = vmatprep.subr.mxu0 0.0
  %1724 = vmatpush1.msra.mxu0 0.0
  %1725 = vmatprep.subr.mxu0 0.0
  %1726 = vmatpush1.msra.mxu0 0.0
  %1727 = vmatprep.subr.mxu0 0.0
  %1728 = vmatpush1.msra.mxu0 0.0
  %1729 = vmatprep.subr.mxu0 0.0
  %1730 = vmatpush1.msra.mxu0 0.0
  %1731 = vmatprep.subr.mxu0 0.0
  %1732 = vmatpush1.msra.mxu0 0.0
  %1733 = vmatprep.subr.mxu0 0.0
  %1734 = vmatpush1.msra.mxu0 0.0
  %1735 = vmatprep.subr.mxu0 0.0
  %1736 = vmatpush1.msra.mxu0 0.0
  %1737 = vmatprep.subr.mxu0 0.0
  %1738 = vmatpush1.msra.mxu0 0.0
  %1739 = vmatprep.subr.mxu0 0.0
  %1740 = vmatpush1.msra.mxu0 0.0
  %1741 = vmatprep.subr.mxu0 0.0
  %1742 = vmatpush1.msra.mxu0 0.0
  %1743 = vmatprep.subr.mxu0 0.0
  %1744 = vmatpush1.msra.mxu0 0.0
  %1745 = vmatprep.subr.mxu0 0.0
  %1746 = vmatpush1.msra.mxu0 0.0
  %1747 = vmatprep.subr.mxu0 0.0
  %1748 = vmatpush1.msra.mxu0 0.0
  %1749 = vmatprep.subr.mxu0 0.0
  %1750 = vmatpush1.msra.mxu0 0.0
  %1751 = vmatprep.subr.mxu0 0.0
  %1752 = vmatpush1.msra.mxu0 0.0
  %1753 = vmatprep.subr.mxu0 0.0
  %1754 = vmatpush1.msra.mxu0 0.0
  %1755 = vmatprep.subr.mxu0 0.0
  %1756 = vmatpush1.msra.mxu0 0.0
  %1757 = vmatprep.mubr.f32.mxu0 0.0
  %1758 = vmatmul.mubr.f32.gmra.mrb[0].mxu0 %v1549
  %v1759 = vpop.f32.mrb[0].mxu0
  %v1760 = vadd.f32 0.0, %v1759
  %v1761 = vpop.f32.mrb[0].mxu0
  %v1762 = vadd.f32 0.0, %v1761
  %1763 = vdwg.mxu0
  %v1764 = vadd.f32 %v1513, %v1618
  %v1765 = vadd.f32 %v1514, %v1620
  %v1766 = vadd.f32 %v1515, %v1689
  %v1767 = vadd.f32 %v1516, %v1691
  %v1768 = vadd.f32 %v1517, %v1760
  %v1769 = vadd.f32 %v1518, %v1762
  %s1770 = scalar_lea.vmem %s0, 56
  %v1771 = vld [vmem:[%s1770] sm:$0xff]
  %1772 = vrot.lane.b32.xlu0 %v11, 78
  %v1773 = vpop.permute.xlu0 %1772
  %1774 = vrot.lane.b32.xlu0 %v12, 78
  %v1775 = vpop.permute.xlu0 %1774
  %1776 = vrot.lane.b32.xlu0 %v13, 78
  %v1777 = vpop.permute.xlu0 %1776
  %1778 = vrot.lane.b32.xlu0 %v14, 78
  %v1779 = vpop.permute.xlu0 %1778
  %1780 = vrot.lane.b32.xlu0 %v15, 78
  %v1781 = vpop.permute.xlu0 %1780
  %1782 = vrot.lane.b32.xlu0 %v16, 78
  %v1783 = vpop.permute.xlu0 %1782
  %1784 = vrot.lane.b32.xlu0 %v17, 78
  %v1785 = vpop.permute.xlu0 %1784
  %vm1786 = vcmask 637952
  %v1787 = vsel %vm1786, %v1773, %v1775
  %v1788 = vsel %vm1786, %v1775, %v1777
  %v1789 = vsel %vm1786, %v1777, %v1779
  %v1790 = vsel %vm1786, %v1779, %v1781
  %v1791 = vsel %vm1786, %v1781, %v1783
  %v1792 = vsel %vm1786, %v1783, %v1785
  %v1800 = vsel %vm55, %v1771, 0
  %1802 = vmatprep.subr.mxu0 %v1788
  %1803 = vmatpush1.msra.mxu0 %v1787
  %1804 = vmatprep.subr.mxu0 0.0
  %1805 = vmatpush1.msra.mxu0 0.0
  %1806 = vmatprep.subr.mxu0 0.0
  %1807 = vmatpush1.msra.mxu0 0.0
  %1808 = vmatprep.subr.mxu0 0.0
  %1809 = vmatpush1.msra.mxu0 0.0
  %1810 = vmatprep.subr.mxu0 0.0
  %1811 = vmatpush1.msra.mxu0 0.0
  %1812 = vmatprep.subr.mxu0 0.0
  %1813 = vmatpush1.msra.mxu0 0.0
  %1814 = vmatprep.subr.mxu0 0.0
  %1815 = vmatpush1.msra.mxu0 0.0
  %1816 = vmatprep.subr.mxu0 0.0
  %1817 = vmatpush1.msra.mxu0 0.0
  %1818 = vmatprep.subr.mxu0 0.0
  %1819 = vmatpush1.msra.mxu0 0.0
  %1820 = vmatprep.subr.mxu0 0.0
  %1821 = vmatpush1.msra.mxu0 0.0
  %1822 = vmatprep.subr.mxu0 0.0
  %1823 = vmatpush1.msra.mxu0 0.0
  %1824 = vmatprep.subr.mxu0 0.0
  %1825 = vmatpush1.msra.mxu0 0.0
  %1826 = vmatprep.subr.mxu0 0.0
  %1827 = vmatpush1.msra.mxu0 0.0
  %1828 = vmatprep.subr.mxu0 0.0
  %1829 = vmatpush1.msra.mxu0 0.0
  %1830 = vmatprep.subr.mxu0 0.0
  %1831 = vmatpush1.msra.mxu0 0.0
  %1832 = vmatprep.subr.mxu0 0.0
  %1833 = vmatpush1.msra.mxu0 0.0
  %1834 = vmatprep.subr.mxu0 0.0
  %1835 = vmatpush1.msra.mxu0 0.0
  %1836 = vmatprep.subr.mxu0 0.0
  %1837 = vmatpush1.msra.mxu0 0.0
  %1838 = vmatprep.subr.mxu0 0.0
  %1839 = vmatpush1.msra.mxu0 0.0
  %1840 = vmatprep.subr.mxu0 0.0
  %1841 = vmatpush1.msra.mxu0 0.0
  %1842 = vmatprep.subr.mxu0 0.0
  %1843 = vmatpush1.msra.mxu0 0.0
  %1844 = vmatprep.subr.mxu0 0.0
  %1845 = vmatpush1.msra.mxu0 0.0
  %1846 = vmatprep.subr.mxu0 0.0
  %1847 = vmatpush1.msra.mxu0 0.0
  %1848 = vmatprep.subr.mxu0 0.0
  %1849 = vmatpush1.msra.mxu0 0.0
  %1850 = vmatprep.subr.mxu0 0.0
  %1851 = vmatpush1.msra.mxu0 0.0
  %1852 = vmatprep.subr.mxu0 0.0
  %1853 = vmatpush1.msra.mxu0 0.0
  %1854 = vmatprep.subr.mxu0 0.0
  %1855 = vmatpush1.msra.mxu0 0.0
  %1856 = vmatprep.subr.mxu0 0.0
  %1857 = vmatpush1.msra.mxu0 0.0
  %1858 = vmatprep.subr.mxu0 0.0
  %1859 = vmatpush1.msra.mxu0 0.0
  %1860 = vmatprep.subr.mxu0 0.0
  %1861 = vmatpush1.msra.mxu0 0.0
  %1862 = vmatprep.subr.mxu0 0.0
  %1863 = vmatpush1.msra.mxu0 0.0
  %1864 = vmatprep.subr.mxu0 0.0
  %1865 = vmatpush1.msra.mxu0 0.0
  %1866 = vmatprep.mubr.f32.mxu0 0.0
  %1867 = vmatmul.mubr.f32.gmra.mrb[0].mxu0 %v1800
  %v1868 = vpop.f32.mrb[0].mxu0
  %v1869 = vadd.f32 0.0, %v1868
  %v1870 = vpop.f32.mrb[0].mxu0
  %v1871 = vadd.f32 0.0, %v1870
  %1872 = vdwg.mxu0
  %1873 = vmatprep.subr.mxu0 %v1790
  %1874 = vmatpush1.msra.mxu0 %v1789
  %1875 = vmatprep.subr.mxu0 0.0
  %1876 = vmatpush1.msra.mxu0 0.0
  %1877 = vmatprep.subr.mxu0 0.0
  %1878 = vmatpush1.msra.mxu0 0.0
  %1879 = vmatprep.subr.mxu0 0.0
  %1880 = vmatpush1.msra.mxu0 0.0
  %1881 = vmatprep.subr.mxu0 0.0
  %1882 = vmatpush1.msra.mxu0 0.0
  %1883 = vmatprep.subr.mxu0 0.0
  %1884 = vmatpush1.msra.mxu0 0.0
  %1885 = vmatprep.subr.mxu0 0.0
  %1886 = vmatpush1.msra.mxu0 0.0
  %1887 = vmatprep.subr.mxu0 0.0
  %1888 = vmatpush1.msra.mxu0 0.0
  %1889 = vmatprep.subr.mxu0 0.0
  %1890 = vmatpush1.msra.mxu0 0.0
  %1891 = vmatprep.subr.mxu0 0.0
  %1892 = vmatpush1.msra.mxu0 0.0
  %1893 = vmatprep.subr.mxu0 0.0
  %1894 = vmatpush1.msra.mxu0 0.0
  %1895 = vmatprep.subr.mxu0 0.0
  %1896 = vmatpush1.msra.mxu0 0.0
  %1897 = vmatprep.subr.mxu0 0.0
  %1898 = vmatpush1.msra.mxu0 0.0
  %1899 = vmatprep.subr.mxu0 0.0
  %1900 = vmatpush1.msra.mxu0 0.0
  %1901 = vmatprep.subr.mxu0 0.0
  %1902 = vmatpush1.msra.mxu0 0.0
  %1903 = vmatprep.subr.mxu0 0.0
  %1904 = vmatpush1.msra.mxu0 0.0
  %1905 = vmatprep.subr.mxu0 0.0
  %1906 = vmatpush1.msra.mxu0 0.0
  %1907 = vmatprep.subr.mxu0 0.0
  %1908 = vmatpush1.msra.mxu0 0.0
  %1909 = vmatprep.subr.mxu0 0.0
  %1910 = vmatpush1.msra.mxu0 0.0
  %1911 = vmatprep.subr.mxu0 0.0
  %1912 = vmatpush1.msra.mxu0 0.0
  %1913 = vmatprep.subr.mxu0 0.0
  %1914 = vmatpush1.msra.mxu0 0.0
  %1915 = vmatprep.subr.mxu0 0.0
  %1916 = vmatpush1.msra.mxu0 0.0
  %1917 = vmatprep.subr.mxu0 0.0
  %1918 = vmatpush1.msra.mxu0 0.0
  %1919 = vmatprep.subr.mxu0 0.0
  %1920 = vmatpush1.msra.mxu0 0.0
  %1921 = vmatprep.subr.mxu0 0.0
  %1922 = vmatpush1.msra.mxu0 0.0
  %1923 = vmatprep.subr.mxu0 0.0
  %1924 = vmatpush1.msra.mxu0 0.0
  %1925 = vmatprep.subr.mxu0 0.0
  %1926 = vmatpush1.msra.mxu0 0.0
  %1927 = vmatprep.subr.mxu0 0.0
  %1928 = vmatpush1.msra.mxu0 0.0
  %1929 = vmatprep.subr.mxu0 0.0
  %1930 = vmatpush1.msra.mxu0 0.0
  %1931 = vmatprep.subr.mxu0 0.0
  %1932 = vmatpush1.msra.mxu0 0.0
  %1933 = vmatprep.subr.mxu0 0.0
  %1934 = vmatpush1.msra.mxu0 0.0
  %1935 = vmatprep.subr.mxu0 0.0
  %1936 = vmatpush1.msra.mxu0 0.0
  %1937 = vmatprep.mubr.f32.mxu0 0.0
  %1938 = vmatmul.mubr.f32.gmra.mrb[0].mxu0 %v1800
  %v1939 = vpop.f32.mrb[0].mxu0
  %v1940 = vadd.f32 0.0, %v1939
  %v1941 = vpop.f32.mrb[0].mxu0
  %v1942 = vadd.f32 0.0, %v1941
  %1943 = vdwg.mxu0
  %1944 = vmatprep.subr.mxu0 %v1792
  %1945 = vmatpush1.msra.mxu0 %v1791
  %1946 = vmatprep.subr.mxu0 0.0
  %1947 = vmatpush1.msra.mxu0 0.0
  %1948 = vmatprep.subr.mxu0 0.0
  %1949 = vmatpush1.msra.mxu0 0.0
  %1950 = vmatprep.subr.mxu0 0.0
  %1951 = vmatpush1.msra.mxu0 0.0
  %1952 = vmatprep.subr.mxu0 0.0
  %1953 = vmatpush1.msra.mxu0 0.0
  %1954 = vmatprep.subr.mxu0 0.0
  %1955 = vmatpush1.msra.mxu0 0.0
  %1956 = vmatprep.subr.mxu0 0.0
  %1957 = vmatpush1.msra.mxu0 0.0
  %1958 = vmatprep.subr.mxu0 0.0
  %1959 = vmatpush1.msra.mxu0 0.0
  %1960 = vmatprep.subr.mxu0 0.0
  %1961 = vmatpush1.msra.mxu0 0.0
  %1962 = vmatprep.subr.mxu0 0.0
  %1963 = vmatpush1.msra.mxu0 0.0
  %1964 = vmatprep.subr.mxu0 0.0
  %1965 = vmatpush1.msra.mxu0 0.0
  %1966 = vmatprep.subr.mxu0 0.0
  %1967 = vmatpush1.msra.mxu0 0.0
  %1968 = vmatprep.subr.mxu0 0.0
  %1969 = vmatpush1.msra.mxu0 0.0
  %1970 = vmatprep.subr.mxu0 0.0
  %1971 = vmatpush1.msra.mxu0 0.0
  %1972 = vmatprep.subr.mxu0 0.0
  %1973 = vmatpush1.msra.mxu0 0.0
  %1974 = vmatprep.subr.mxu0 0.0
  %1975 = vmatpush1.msra.mxu0 0.0
  %1976 = vmatprep.subr.mxu0 0.0
  %1977 = vmatpush1.msra.mxu0 0.0
  %1978 = vmatprep.subr.mxu0 0.0
  %1979 = vmatpush1.msra.mxu0 0.0
  %1980 = vmatprep.subr.mxu0 0.0
  %1981 = vmatpush1.msra.mxu0 0.0
  %1982 = vmatprep.subr.mxu0 0.0
  %1983 = vmatpush1.msra.mxu0 0.0
  %1984 = vmatprep.subr.mxu0 0.0
  %1985 = vmatpush1.msra.mxu0 0.0
  %1986 = vmatprep.subr.mxu0 0.0
  %1987 = vmatpush1.msra.mxu0 0.0
  %1988 = vmatprep.subr.mxu0 0.0
  %1989 = vmatpush1.msra.mxu0 0.0
  %1990 = vmatprep.subr.mxu0 0.0
  %1991 = vmatpush1.msra.mxu0 0.0
  %1992 = vmatprep.subr.mxu0 0.0
  %1993 = vmatpush1.msra.mxu0 0.0
  %1994 = vmatprep.subr.mxu0 0.0
  %1995 = vmatpush1.msra.mxu0 0.0
  %1996 = vmatprep.subr.mxu0 0.0
  %1997 = vmatpush1.msra.mxu0 0.0
  %1998 = vmatprep.subr.mxu0 0.0
  %1999 = vmatpush1.msra.mxu0 0.0
  %2000 = vmatprep.subr.mxu0 0.0
  %2001 = vmatpush1.msra.mxu0 0.0
  %2002 = vmatprep.subr.mxu0 0.0
  %2003 = vmatpush1.msra.mxu0 0.0
  %2004 = vmatprep.subr.mxu0 0.0
  %2005 = vmatpush1.msra.mxu0 0.0
  %2006 = vmatprep.subr.mxu0 0.0
  %2007 = vmatpush1.msra.mxu0 0.0
  %2008 = vmatprep.mubr.f32.mxu0 0.0
  %2009 = vmatmul.mubr.f32.gmra.mrb[0].mxu0 %v1800
  %v2010 = vpop.f32.mrb[0].mxu0
  %v2011 = vadd.f32 0.0, %v2010
  %v2012 = vpop.f32.mrb[0].mxu0
  %v2013 = vadd.f32 0.0, %v2012
  %2014 = vdwg.mxu0
  %v2015 = vadd.f32 %v1764, %v1869
  %v2016 = vadd.f32 %v1765, %v1871
  %v2017 = vadd.f32 %v1766, %v1940
  %v2018 = vadd.f32 %v1767, %v1942
  %v2019 = vadd.f32 %v1768, %v2011
  %v2020 = vadd.f32 %v1769, %v2013
  %s2021 = scalar_lea.vmem %s0, 64
  %v2022 = vld [vmem:[%s2021] sm:$0xff]
  %2023 = vrot.lane.b32.xlu0 %v11, 77
  %v2024 = vpop.permute.xlu0 %2023
  %2025 = vrot.lane.b32.xlu0 %v12, 77
  %v2026 = vpop.permute.xlu0 %2025
  %2027 = vrot.lane.b32.xlu0 %v13, 77
  %v2028 = vpop.permute.xlu0 %2027
  %2029 = vrot.lane.b32.xlu0 %v14, 77
  %v2030 = vpop.permute.xlu0 %2029
  %2031 = vrot.lane.b32.xlu0 %v15, 77
  %v2032 = vpop.permute.xlu0 %2031
  %2033 = vrot.lane.b32.xlu0 %v16, 77
  %v2034 = vpop.permute.xlu0 %2033
  %2035 = vrot.lane.b32.xlu0 %v17, 77
  %v2036 = vpop.permute.xlu0 %2035
  %vm2037 = vcmask 629760
  %v2038 = vsel %vm2037, %v2024, %v2026
  %v2039 = vsel %vm2037, %v2026, %v2028
  %v2040 = vsel %vm2037, %v2028, %v2030
  %v2041 = vsel %vm2037, %v2030, %v2032
  %v2042 = vsel %vm2037, %v2032, %v2034
  %v2043 = vsel %vm2037, %v2034, %v2036
  %v2051 = vsel %vm55, %v2022, 0
  %2053 = vmatprep.subr.mxu0 %v2039
  %2054 = vmatpush1.msra.mxu0 %v2038
  %2055 = vmatprep.subr.mxu0 0.0
  %2056 = vmatpush1.msra.mxu0 0.0
  %2057 = vmatprep.subr.mxu0 0.0
  %2058 = vmatpush1.msra.mxu0 0.0
  %2059 = vmatprep.subr.mxu0 0.0
  %2060 = vmatpush1.msra.mxu0 0.0
  %2061 = vmatprep.subr.mxu0 0.0
  %2062 = vmatpush1.msra.mxu0 0.0
  %2063 = vmatprep.subr.mxu0 0.0
  %2064 = vmatpush1.msra.mxu0 0.0
  %2065 = vmatprep.subr.mxu0 0.0
  %2066 = vmatpush1.msra.mxu0 0.0
  %2067 = vmatprep.subr.mxu0 0.0
  %2068 = vmatpush1.msra.mxu0 0.0
  %2069 = vmatprep.subr.mxu0 0.0
  %2070 = vmatpush1.msra.mxu0 0.0
  %2071 = vmatprep.subr.mxu0 0.0
  %2072 = vmatpush1.msra.mxu0 0.0
  %2073 = vmatprep.subr.mxu0 0.0
  %2074 = vmatpush1.msra.mxu0 0.0
  %2075 = vmatprep.subr.mxu0 0.0
  %2076 = vmatpush1.msra.mxu0 0.0
  %2077 = vmatprep.subr.mxu0 0.0
  %2078 = vmatpush1.msra.mxu0 0.0
  %2079 = vmatprep.subr.mxu0 0.0
  %2080 = vmatpush1.msra.mxu0 0.0
  %2081 = vmatprep.subr.mxu0 0.0
  %2082 = vmatpush1.msra.mxu0 0.0
  %2083 = vmatprep.subr.mxu0 0.0
  %2084 = vmatpush1.msra.mxu0 0.0
  %2085 = vmatprep.subr.mxu0 0.0
  %2086 = vmatpush1.msra.mxu0 0.0
  %2087 = vmatprep.subr.mxu0 0.0
  %2088 = vmatpush1.msra.mxu0 0.0
  %2089 = vmatprep.subr.mxu0 0.0
  %2090 = vmatpush1.msra.mxu0 0.0
  %2091 = vmatprep.subr.mxu0 0.0
  %2092 = vmatpush1.msra.mxu0 0.0
  %2093 = vmatprep.subr.mxu0 0.0
  %2094 = vmatpush1.msra.mxu0 0.0
  %2095 = vmatprep.subr.mxu0 0.0
  %2096 = vmatpush1.msra.mxu0 0.0
  %2097 = vmatprep.subr.mxu0 0.0
  %2098 = vmatpush1.msra.mxu0 0.0
  %2099 = vmatprep.subr.mxu0 0.0
  %2100 = vmatpush1.msra.mxu0 0.0
  %2101 = vmatprep.subr.mxu0 0.0
  %2102 = vmatpush1.msra.mxu0 0.0
  %2103 = vmatprep.subr.mxu0 0.0
  %2104 = vmatpush1.msra.mxu0 0.0
  %2105 = vmatprep.subr.mxu0 0.0
  %2106 = vmatpush1.msra.mxu0 0.0
  %2107 = vmatprep.subr.mxu0 0.0
  %2108 = vmatpush1.msra.mxu0 0.0
  %2109 = vmatprep.subr.mxu0 0.0
  %2110 = vmatpush1.msra.mxu0 0.0
  %2111 = vmatprep.subr.mxu0 0.0
  %2112 = vmatpush1.msra.mxu0 0.0
  %2113 = vmatprep.subr.mxu0 0.0
  %2114 = vmatpush1.msra.mxu0 0.0
  %2115 = vmatprep.subr.mxu0 0.0
  %2116 = vmatpush1.msra.mxu0 0.0
  %2117 = vmatprep.mubr.f32.mxu0 0.0
  %2118 = vmatmul.mubr.f32.gmra.mrb[0].mxu0 %v2051
  %v2119 = vpop.f32.mrb[0].mxu0
  %v2120 = vadd.f32 0.0, %v2119
  %v2121 = vpop.f32.mrb[0].mxu0
  %v2122 = vadd.f32 0.0, %v2121
  %2123 = vdwg.mxu0
  %2124 = vmatprep.subr.mxu0 %v2041
  %2125 = vmatpush1.msra.mxu0 %v2040
  %2126 = vmatprep.subr.mxu0 0.0
  %2127 = vmatpush1.msra.mxu0 0.0
  %2128 = vmatprep.subr.mxu0 0.0
  %2129 = vmatpush1.msra.mxu0 0.0
  %2130 = vmatprep.subr.mxu0 0.0
  %2131 = vmatpush1.msra.mxu0 0.0
  %2132 = vmatprep.subr.mxu0 0.0
  %2133 = vmatpush1.msra.mxu0 0.0
  %2134 = vmatprep.subr.mxu0 0.0
  %2135 = vmatpush1.msra.mxu0 0.0
  %2136 = vmatprep.subr.mxu0 0.0
  %2137 = vmatpush1.msra.mxu0 0.0
  %2138 = vmatprep.subr.mxu0 0.0
  %2139 = vmatpush1.msra.mxu0 0.0
  %2140 = vmatprep.subr.mxu0 0.0
  %2141 = vmatpush1.msra.mxu0 0.0
  %2142 = vmatprep.subr.mxu0 0.0
  %2143 = vmatpush1.msra.mxu0 0.0
  %2144 = vmatprep.subr.mxu0 0.0
  %2145 = vmatpush1.msra.mxu0 0.0
  %2146 = vmatprep.subr.mxu0 0.0
  %2147 = vmatpush1.msra.mxu0 0.0
  %2148 = vmatprep.subr.mxu0 0.0
  %2149 = vmatpush1.msra.mxu0 0.0
  %2150 = vmatprep.subr.mxu0 0.0
  %2151 = vmatpush1.msra.mxu0 0.0
  %2152 = vmatprep.subr.mxu0 0.0
  %2153 = vmatpush1.msra.mxu0 0.0
  %2154 = vmatprep.subr.mxu0 0.0
  %2155 = vmatpush1.msra.mxu0 0.0
  %2156 = vmatprep.subr.mxu0 0.0
  %2157 = vmatpush1.msra.mxu0 0.0
  %2158 = vmatprep.subr.mxu0 0.0
  %2159 = vmatpush1.msra.mxu0 0.0
  %2160 = vmatprep.subr.mxu0 0.0
  %2161 = vmatpush1.msra.mxu0 0.0
  %2162 = vmatprep.subr.mxu0 0.0
  %2163 = vmatpush1.msra.mxu0 0.0
  %2164 = vmatprep.subr.mxu0 0.0
  %2165 = vmatpush1.msra.mxu0 0.0
  %2166 = vmatprep.subr.mxu0 0.0
  %2167 = vmatpush1.msra.mxu0 0.0
  %2168 = vmatprep.subr.mxu0 0.0
  %2169 = vmatpush1.msra.mxu0 0.0
  %2170 = vmatprep.subr.mxu0 0.0
  %2171 = vmatpush1.msra.mxu0 0.0
  %2172 = vmatprep.subr.mxu0 0.0
  %2173 = vmatpush1.msra.mxu0 0.0
  %2174 = vmatprep.subr.mxu0 0.0
  %2175 = vmatpush1.msra.mxu0 0.0
  %2176 = vmatprep.subr.mxu0 0.0
  %2177 = vmatpush1.msra.mxu0 0.0
  %2178 = vmatprep.subr.mxu0 0.0
  %2179 = vmatpush1.msra.mxu0 0.0
  %2180 = vmatprep.subr.mxu0 0.0
  %2181 = vmatpush1.msra.mxu0 0.0
  %2182 = vmatprep.subr.mxu0 0.0
  %2183 = vmatpush1.msra.mxu0 0.0
  %2184 = vmatprep.subr.mxu0 0.0
  %2185 = vmatpush1.msra.mxu0 0.0
  %2186 = vmatprep.subr.mxu0 0.0
  %2187 = vmatpush1.msra.mxu0 0.0
  %2188 = vmatprep.mubr.f32.mxu0 0.0
  %2189 = vmatmul.mubr.f32.gmra.mrb[0].mxu0 %v2051
  %v2190 = vpop.f32.mrb[0].mxu0
  %v2191 = vadd.f32 0.0, %v2190
  %v2192 = vpop.f32.mrb[0].mxu0
  %v2193 = vadd.f32 0.0, %v2192
  %2194 = vdwg.mxu0
  %2195 = vmatprep.subr.mxu0 %v2043
  %2196 = vmatpush1.msra.mxu0 %v2042
  %2197 = vmatprep.subr.mxu0 0.0
  %2198 = vmatpush1.msra.mxu0 0.0
  %2199 = vmatprep.subr.mxu0 0.0
  %2200 = vmatpush1.msra.mxu0 0.0
  %2201 = vmatprep.subr.mxu0 0.0
  %2202 = vmatpush1.msra.mxu0 0.0
  %2203 = vmatprep.subr.mxu0 0.0
  %2204 = vmatpush1.msra.mxu0 0.0
  %2205 = vmatprep.subr.mxu0 0.0
  %2206 = vmatpush1.msra.mxu0 0.0
  %2207 = vmatprep.subr.mxu0 0.0
  %2208 = vmatpush1.msra.mxu0 0.0
  %2209 = vmatprep.subr.mxu0 0.0
  %2210 = vmatpush1.msra.mxu0 0.0
  %2211 = vmatprep.subr.mxu0 0.0
  %2212 = vmatpush1.msra.mxu0 0.0
  %2213 = vmatprep.subr.mxu0 0.0
  %2214 = vmatpush1.msra.mxu0 0.0
  %2215 = vmatprep.subr.mxu0 0.0
  %2216 = vmatpush1.msra.mxu0 0.0
  %2217 = vmatprep.subr.mxu0 0.0
  %2218 = vmatpush1.msra.mxu0 0.0
  %2219 = vmatprep.subr.mxu0 0.0
  %2220 = vmatpush1.msra.mxu0 0.0
  %2221 = vmatprep.subr.mxu0 0.0
  %2222 = vmatpush1.msra.mxu0 0.0
  %2223 = vmatprep.subr.mxu0 0.0
  %2224 = vmatpush1.msra.mxu0 0.0
  %2225 = vmatprep.subr.mxu0 0.0
  %2226 = vmatpush1.msra.mxu0 0.0
  %2227 = vmatprep.subr.mxu0 0.0
  %2228 = vmatpush1.msra.mxu0 0.0
  %2229 = vmatprep.subr.mxu0 0.0
  %2230 = vmatpush1.msra.mxu0 0.0
  %2231 = vmatprep.subr.mxu0 0.0
  %2232 = vmatpush1.msra.mxu0 0.0
  %2233 = vmatprep.subr.mxu0 0.0
  %2234 = vmatpush1.msra.mxu0 0.0
  %2235 = vmatprep.subr.mxu0 0.0
  %2236 = vmatpush1.msra.mxu0 0.0
  %2237 = vmatprep.subr.mxu0 0.0
  %2238 = vmatpush1.msra.mxu0 0.0
  %2239 = vmatprep.subr.mxu0 0.0
  %2240 = vmatpush1.msra.mxu0 0.0
  %2241 = vmatprep.subr.mxu0 0.0
  %2242 = vmatpush1.msra.mxu0 0.0
  %2243 = vmatprep.subr.mxu0 0.0
  %2244 = vmatpush1.msra.mxu0 0.0
  %2245 = vmatprep.subr.mxu0 0.0
  %2246 = vmatpush1.msra.mxu0 0.0
  %2247 = vmatprep.subr.mxu0 0.0
  %2248 = vmatpush1.msra.mxu0 0.0
  %2249 = vmatprep.subr.mxu0 0.0
  %2250 = vmatpush1.msra.mxu0 0.0
  %2251 = vmatprep.subr.mxu0 0.0
  %2252 = vmatpush1.msra.mxu0 0.0
  %2253 = vmatprep.subr.mxu0 0.0
  %2254 = vmatpush1.msra.mxu0 0.0
  %2255 = vmatprep.subr.mxu0 0.0
  %2256 = vmatpush1.msra.mxu0 0.0
  %2257 = vmatprep.subr.mxu0 0.0
  %2258 = vmatpush1.msra.mxu0 0.0
  %2259 = vmatprep.mubr.f32.mxu0 0.0
  %2260 = vmatmul.mubr.f32.gmra.mrb[0].mxu0 %v2051
  %v2261 = vpop.f32.mrb[0].mxu0
  %v2262 = vadd.f32 0.0, %v2261
  %v2263 = vpop.f32.mrb[0].mxu0
  %v2264 = vadd.f32 0.0, %v2263
  %2265 = vdwg.mxu0
  %v2266 = vadd.f32 %v2015, %v2120
  %v2267 = vadd.f32 %v2016, %v2122
  %v2268 = vadd.f32 %v2017, %v2191
  %v2269 = vadd.f32 %v2018, %v2193
  %v2270 = vadd.f32 %v2019, %v2262
  %v2271 = vadd.f32 %v2020, %v2264
  %2272 = vst [vmem:[%s2] sm:$0xff] %v2266
  %2273 = vst [vmem:[%s2 + $0x8] sm:$0xff] %v2267
  %2274 = vst [vmem:[%s2 + $0x10] sm:$0xff] %v2268
  %2275 = vst [vmem:[%s2 + $0x18] sm:$0xff] %v2269
  %2276 = vst [vmem:[%s2 + $0x20] sm:$0xff] %v2270
  %2277 = vst [vmem:[%s2 + $0x28] sm:$0xff] %v2271
  // Predicated region
  $region10: #{model_forward.1} parent=0 // pred_check
    _
  $region11: #{model_forward.1} parent=0 // pred_check_branch
    %2279 = sbr.rel (0) target = $region13
  $region12: #{model_forward.1} parent=0 // pred_region
    _
  $region13: #{model_forward.1} parent=0 // pred_fallthru
    _
  // Predicated region
  $region14: #{model_forward.1} parent=0 // pred_check
    _
  $region15: #{model_forward.1} parent=0 // pred_check_branch
    %2281 = sbr.rel (0) target = $region17
  $region16: #{model_forward.1} parent=0 // pred_region
    _
  $region17: #{model_forward.1} parent=0 // pred_fallthru
    _

</llo_original>
